<compile_context>
chip_gen: v5e
topology: v5e:2x2
jax: 0.10.0
libtpu: 0.0.40
codegen_flags: <defaults>
</compile_context>

<pallas_src>
import functools

import numpy as np
import jax
import jax.numpy as jnp
from jax.experimental import pallas as pl
from jax.experimental.pallas import tpu as pltpu

NUM_VIEWS = 4
QUAD = 14 * 14              # 196 features per quadrant
IN_RAW = 28 * 28            # 784 raw pixels, row-major flattening
HID1 = NUM_VIEWS * 128      # 512 (concatenated per-view hidden)
FEAT = NUM_VIEWS * 32       # 128 (concatenated per-view features)
NUM_CLASSES = 10
CLS_PAD = 128               # classes padded to full lane width


# ----------------------------- Pallas kernel ------------------------------ #
def _qfourview_kernel(
    x_ref,       # (TB, 784)  f32   raw flattened image (bf16 cast done here)
    w1_ref,      # (784, 512) bf16  row-permuted block-diagonal Linear(196,128) x4
    b1_ref,      # (1, 512)   f32
    w2_ref,      # (512, 128) bf16  block-diagonal Linear(128,32) x4
    b2_ref,      # (1, 128)   f32
    wc1_ref,     # (128, 128) bf16  classifier Linear(128,128)
    bc1_ref,     # (1, 128)   f32
    wc2_ref,     # (128, 128) bf16  classifier Linear(128,10) zero-padded to 128
    bc2_ref,     # (1, 128)   f32   padded class lanes pre-set to -1e30
    out_ref,     # (TB, 128)  bf16  log-probs (cols 10..127 are padding)
):
    # Cast to bf16 in-kernel so the HBM stream stays the raw f32 image only.
    x = x_ref[...].astype(jnp.bfloat16)                                  # (TB, 784)

    # Per-view Linear(196,128) + ReLU, fused via the row-permuted block-diag W1.
    h = jnp.dot(x, w1_ref[...], preferred_element_type=jnp.float32) + b1_ref[...]
    h = jnp.maximum(h, 0.0)

    # Per-view Linear(128,32) + Sigmoid, fused via block-diagonal W2.
    # Result (TB, 128) is already the concatenated feature slab.
    f = jnp.dot(h.astype(jnp.bfloat16), w2_ref[...],
                preferred_element_type=jnp.float32) + b2_ref[...]
    f = jax.nn.sigmoid(f)

    # TODO(synk): `quantizer` is an injected module in the PyTorch code; it is
    # modeled here as the identity fake-quant.
    feats_q = f

    # Classifier: Linear(128,128) + ReLU, Linear(128,10 padded to 128).
    h2 = jnp.dot(feats_q.astype(jnp.bfloat16), wc1_ref[...],
                 preferred_element_type=jnp.float32) + bc1_ref[...]
    h2 = jnp.maximum(h2, 0.0)
    # bc2 carries -1e30 in the padded class lanes -> no iota/where mask needed.
    logits = jnp.dot(h2.astype(jnp.bfloat16), wc2_ref[...],
                     preferred_element_type=jnp.float32) + bc2_ref[...]

    # log_softmax over the (lane) class axis.
    m = jnp.max(logits, axis=-1, keepdims=True)
    z = logits - m
    lse = jnp.log(jnp.sum(jnp.exp(z), axis=-1, keepdims=True))
    out_ref[...] = (z - lse).astype(out_ref.dtype)


# ------------------------------ JAX wrapper -------------------------------- #
def _round_up(n, m):
    return (n + m - 1) // m * m


def _choose_tile(B, tb):
    """Batch tile: multiple of 16, big enough to amortize grid-step overhead,
    and (when the batch allows it) small enough for >=2 grid steps so the
    'parallel' axis can be sharded across TensorCores (v7x has 2 TCs)."""
    tb = max(16, _round_up(min(tb, 4096), 16))
    if B >= 2 * tb:
        return tb
    if B > 16:
        return _round_up(-(-B // 2), 16)     # two grid steps
    return _round_up(max(B, 1), 16)          # tiny batch: single step


@functools.partial(jax.jit, static_argnames=("tb",))
def qfourview_forward(x, packed, tb=2048):
    """x: (B, 1, 28, 28) float32 NCHW.  Returns (B, 10) bf16 log-probs."""
    B = x.shape[0]
    xf = x.reshape(B, IN_RAW)                 # free reshape; no gather/pad/cast pass

    TB = _choose_tile(B, tb)                  # sweep tb in {1024, 2048, 4096}
    B_pad = _round_up(B, TB)
    if B_pad != B:
        xf = jnp.pad(xf, ((0, B_pad - B), (0, 0)))
    nb = B_pad // TB

    const = lambda i: (0, 0)                  # weights stay VMEM-resident
    in_specs = [
        # If a profile shows exposed input DMA, add pipeline_mode=pl.Buffered(3) here.
        pl.BlockSpec((TB, IN_RAW), lambda i: (i, 0)),       # x: batch-tiled
        pl.BlockSpec((IN_RAW, HID1), const),
        pl.BlockSpec((1, HID1), const),
        pl.BlockSpec((HID1, FEAT), const),
        pl.BlockSpec((1, FEAT), const),
        pl.BlockSpec((FEAT, FEAT), const),
        pl.BlockSpec((1, FEAT), const),
        pl.BlockSpec((FEAT, CLS_PAD), const),
        pl.BlockSpec((1, CLS_PAD), const),
    ]

    macs_row = IN_RAW * HID1 + HID1 * FEAT + FEAT * FEAT + FEAT * CLS_PAD
    weight_bytes = 2 * macs_row + 4 * (HID1 + FEAT + FEAT + CLS_PAD)
    cost = pl.CostEstimate(
        flops=2 * B_pad * macs_row,
        transcendentals=B_pad * (FEAT + CLS_PAD),           # sigmoid + exp
        bytes_accessed=B_pad * IN_RAW * 4 + B_pad * CLS_PAD * 2 + weight_bytes,
    )

    out = pl.pallas_call(
        _qfourview_kernel,
        out_shape=jax.ShapeDtypeStruct((B_pad, CLS_PAD), jnp.bfloat16),
        grid=(nb,),
        in_specs=in_specs,
        out_specs=pl.BlockSpec((TB, CLS_PAD), lambda i: (i, 0)),
        compiler_params=pltpu.CompilerParams(
            dimension_semantics=("parallel",),
            vmem_limit_bytes=48 * 1024 * 1024,   # fits v7x's 64 MiB physical VMEM
        ),
        cost_estimate=cost,
    )(
        xf,
        packed["w1"], packed["b1"],
        packed["w2"], packed["b2"],
        packed["wc1"], packed["bc1"],
        packed["wc2"], packed["bc2"],
    )
    return out[:B, :NUM_CLASSES]


# ------------------------- deterministic parameters ------------------------ #
def init_params(key):
    """Logical (PyTorch-shaped, transposed to (in,out)) f32 parameters."""
    ks = jax.random.split(key, 8)
    scale = 0.05
    return dict(
        w1=scale * jax.random.normal(ks[0], (NUM_VIEWS, QUAD, 128), jnp.float32),
        b1=scale * jax.random.normal(ks[1], (NUM_VIEWS, 128), jnp.float32),
        w2=scale * jax.random.normal(ks[2], (NUM_VIEWS, 128, 32), jnp.float32),
        b2=scale * jax.random.normal(ks[3], (NUM_VIEWS, 32), jnp.float32),
        wc1=scale * jax.random.normal(ks[4], (FEAT, 128), jnp.float32),
        bc1=scale * jax.random.normal(ks[5], (128,), jnp.float32),
        wc2=scale * jax.random.normal(ks[6], (128, NUM_CLASSES), jnp.float32),
        bc2=scale * jax.random.normal(ks[7], (NUM_CLASSES,), jnp.float32),
    )


def pack_params(p):
    """Pack per-view weights into a row-permuted block-diagonal layout that
    consumes the raw row-major flattening of the 28x28 image directly."""
    w1 = np.asarray(p["w1"], np.float32)      # (4, 196, 128)
    w2 = np.asarray(p["w2"], np.float32)      # (4, 128, 32)

    # For each raw pixel index px = r*28 + c: which view and which within-view
    # index it feeds (matches the PyTorch quadrant slicing + reshape order).
    r = np.arange(IN_RAW) // 28
    c = np.arange(IN_RAW) % 28
    view = np.where(r < 14, np.where(c < 14, 0, 3), np.where(c < 14, 1, 2))
    within = (r % 14) * 14 + (c % 14)

    W1 = np.zeros((IN_RAW, HID1), np.float32)
    W2 = np.zeros((HID1, FEAT), np.float32)
    for v in range(NUM_VIEWS):
        rows = np.nonzero(view == v)[0]
        W1[rows, v * 128:(v + 1) * 128] = w1[v][within[rows]]
        W2[v * 128:(v + 1) * 128, v * 32:(v + 1) * 32] = w2[v]

    Wc2 = np.zeros((FEAT, CLS_PAD), np.float32)
    Wc2[:, :NUM_CLASSES] = np.asarray(p["wc2"], np.float32)
    # Bake the padded-class mask into the bias: lanes >= NUM_CLASSES get -1e30.
    bc2 = np.full((1, CLS_PAD), -1e30, np.float32)
    bc2[0, :NUM_CLASSES] = np.asarray(p["bc2"], np.float32)

    return dict(
        w1=jnp.asarray(W1, jnp.bfloat16),
        b1=jnp.asarray(np.asarray(p["b1"], np.float32).reshape(1, HID1)),
        w2=jnp.asarray(W2, jnp.bfloat16),
        b2=jnp.asarray(np.asarray(p["b2"], np.float32).reshape(1, FEAT)),
        wc1=jnp.asarray(np.asarray(p["wc1"], np.float32), jnp.bfloat16),
        bc1=jnp.asarray(np.asarray(p["bc1"], np.float32).reshape(1, FEAT)),
        wc2=jnp.asarray(Wc2, jnp.bfloat16),
        bc2=jnp.asarray(bc2),
    )


# ------------------------------- reference --------------------------------- #
def reference_forward(x, p):
    """f32 per-view reference matching the original PyTorch module."""
    B = x.shape[0]
    x1 = x[:, :, :14, :14].reshape(B, QUAD)
    x2 = x[:, :, 14:, :14].reshape(B, QUAD)
    x3 = x[:, :, 14:, 14:].reshape(B, QUAD)
    x4 = x[:, :, :14, 14:].reshape(B, QUAD)
    feats = []
    for v, xq in enumerate([x1, x2, x3, x4]):
        h = jax.nn.relu(xq @ p["w1"][v] + p["b1"][v])
        feats.append(jax.nn.sigmoid(h @ p["w2"][v] + p["b2"][v]))
    f = jnp.concatenate(feats, axis=-1)
    h = jax.nn.relu(f @ p["wc1"] + p["bc1"])
    logits = h @ p["wc2"] + p["bc2"]
    return jax.nn.log_softmax(logits, axis=-1)


if __name__ == "__main__":
    key = jax.random.PRNGKey(0)
    kx, kp = jax.random.split(key)

    B = 2
    x = jax.random.normal(kx, (B, 1, 28, 28), jnp.float32)   # MNIST-like NCHW
    params = init_params(kp)
    packed = pack_params(params)

    out = qfourview_forward(x, packed)
    out = jax.block_until_ready(out)

    ref = reference_forward(x, params)
    assert out.shape == (B, NUM_CLASSES)
    assert bool(jnp.all(jnp.isfinite(out)))
    # bf16 weights/activations/output vs f32 reference -> loosened tolerance.
    assert jnp.allclose(out.astype(jnp.float32), ref, rtol=3e-2, atol=3e-2), \
        "mismatch vs reference"

    print("KERNEL_OK")
</pallas_src>

<mosaic_0001>
module attributes {stable_mosaic.version = 11 : i64} {
  func.func @_qfourview_kernel(%arg0: i32, %arg1: memref<16x784xf32, #tpu.memory_space<vmem>>, %arg2: memref<784x512xbf16, #tpu.memory_space<vmem>>, %arg3: memref<1x512xf32, #tpu.memory_space<vmem>>, %arg4: memref<512x128xbf16, #tpu.memory_space<vmem>>, %arg5: memref<1x128xf32, #tpu.memory_space<vmem>>, %arg6: memref<128x128xbf16, #tpu.memory_space<vmem>>, %arg7: memref<1x128xf32, #tpu.memory_space<vmem>>, %arg8: memref<128x128xbf16, #tpu.memory_space<vmem>>, %arg9: memref<1x128xf32, #tpu.memory_space<vmem>>, %arg10: memref<16x128xbf16, #tpu.memory_space<vmem>>) attributes {dimension_semantics = [#tpu.dimension_semantics<parallel>], iteration_bounds = array<i64: 1>, scalar_prefetch = 0 : i64, scratch_operands = 0 : i64, tpu.core_type = #tpu.core_type<tc>, window_params = [{transform_indices = @transform_0, window_bounds = array<i64: 16, 784>}, {pipeline_mode = #tpu.pipeline_mode<synchronous>, transform_indices = @transform_1, window_bounds = array<i64: 784, 512>}, {pipeline_mode = #tpu.pipeline_mode<synchronous>, transform_indices = @transform_2, window_bounds = array<i64: 1, 512>}, {pipeline_mode = #tpu.pipeline_mode<synchronous>, transform_indices = @transform_3, window_bounds = array<i64: 512, 128>}, {pipeline_mode = #tpu.pipeline_mode<synchronous>, transform_indices = @transform_4, window_bounds = array<i64: 1, 128>}, {pipeline_mode = #tpu.pipeline_mode<synchronous>, transform_indices = @transform_5, window_bounds = array<i64: 128, 128>}, {pipeline_mode = #tpu.pipeline_mode<synchronous>, transform_indices = @transform_6, window_bounds = array<i64: 1, 128>}, {pipeline_mode = #tpu.pipeline_mode<synchronous>, transform_indices = @transform_7, window_bounds = array<i64: 128, 128>}, {pipeline_mode = #tpu.pipeline_mode<synchronous>, transform_indices = @transform_8, window_bounds = array<i64: 1, 128>}, {transform_indices = @transform_9, window_bounds = array<i64: 16, 128>}]} {
    %c0 = arith.constant 0 : index
    %c0_0 = arith.constant 0 : index
    %0 = vector.load %arg1[%c0, %c0_0] : memref<16x784xf32, #tpu.memory_space<vmem>>, vector<16x784xf32>
    %1 = arith.truncf %0 : vector<16x784xf32> to vector<16x784xbf16>
    %c0_1 = arith.constant 0 : index
    %c0_2 = arith.constant 0 : index
    %2 = vector.load %arg2[%c0_1, %c0_2] : memref<784x512xbf16, #tpu.memory_space<vmem>>, vector<784x512xbf16>
    %cst = arith.constant dense<0.000000e+00> : vector<16x512xf32>
    %3 = tpu.matmul %1, %2, %cst {dimension_numbers = #tpu.dot_dimension_numbers<[1], [0], [0], [1], [0, 0, 1, 1], [], []>} : vector<16x784xbf16>, vector<784x512xbf16>, vector<16x512xf32> -> vector<16x512xf32>
    %c0_3 = arith.constant 0 : index
    %c0_4 = arith.constant 0 : index
    %4 = vector.load %arg3[%c0_3, %c0_4] : memref<1x512xf32, #tpu.memory_space<vmem>>, vector<1x512xf32>
    %5 = vector.broadcast %4 : vector<1x512xf32> to vector<16x512xf32>
    %6 = arith.addf %3, %5 : vector<16x512xf32>
    %cst_5 = arith.constant 0.000000e+00 : f32
    %7 = vector.broadcast %cst_5 : f32 to vector<16x512xf32>
    %8 = arith.maximumf %6, %7 : vector<16x512xf32>
    %9 = arith.truncf %8 : vector<16x512xf32> to vector<16x512xbf16>
    %c0_6 = arith.constant 0 : index
    %c0_7 = arith.constant 0 : index
    %10 = vector.load %arg4[%c0_6, %c0_7] : memref<512x128xbf16, #tpu.memory_space<vmem>>, vector<512x128xbf16>
    %cst_8 = arith.constant dense<0.000000e+00> : vector<16x128xf32>
    %11 = tpu.matmul %9, %10, %cst_8 {dimension_numbers = #tpu.dot_dimension_numbers<[1], [0], [0], [1], [0, 0, 1, 1], [], []>} : vector<16x512xbf16>, vector<512x128xbf16>, vector<16x128xf32> -> vector<16x128xf32>
    %c0_9 = arith.constant 0 : index
    %c0_10 = arith.constant 0 : index
    %12 = vector.load %arg5[%c0_9, %c0_10] : memref<1x128xf32, #tpu.memory_space<vmem>>, vector<1x128xf32>
    %13 = vector.broadcast %12 : vector<1x128xf32> to vector<16x128xf32>
    %14 = arith.addf %11, %13 : vector<16x128xf32>
    %15 = arith.negf %14 : vector<16x128xf32>
    %16 = math.exp %15 : vector<16x128xf32>
    %cst_11 = arith.constant 1.000000e+00 : f32
    %17 = vector.broadcast %cst_11 : f32 to vector<16x128xf32>
    %18 = arith.addf %17, %16 : vector<16x128xf32>
    %19 = arith.divf %17, %18 : vector<16x128xf32>
    %20 = arith.truncf %19 : vector<16x128xf32> to vector<16x128xbf16>
    %c0_12 = arith.constant 0 : index
    %c0_13 = arith.constant 0 : index
    %21 = vector.load %arg6[%c0_12, %c0_13] : memref<128x128xbf16, #tpu.memory_space<vmem>>, vector<128x128xbf16>
    %cst_14 = arith.constant dense<0.000000e+00> : vector<16x128xf32>
    %22 = tpu.matmul %20, %21, %cst_14 {dimension_numbers = #tpu.dot_dimension_numbers<[1], [0], [0], [1], [0, 0, 1, 1], [], []>} : vector<16x128xbf16>, vector<128x128xbf16>, vector<16x128xf32> -> vector<16x128xf32>
    %c0_15 = arith.constant 0 : index
    %c0_16 = arith.constant 0 : index
    %23 = vector.load %arg7[%c0_15, %c0_16] : memref<1x128xf32, #tpu.memory_space<vmem>>, vector<1x128xf32>
    %24 = vector.broadcast %23 : vector<1x128xf32> to vector<16x128xf32>
    %25 = arith.addf %22, %24 : vector<16x128xf32>
    %cst_17 = arith.constant 0.000000e+00 : f32
    %26 = vector.broadcast %cst_17 : f32 to vector<16x128xf32>
    %27 = arith.maximumf %25, %26 : vector<16x128xf32>
    %28 = arith.truncf %27 : vector<16x128xf32> to vector<16x128xbf16>
    %c0_18 = arith.constant 0 : index
    %c0_19 = arith.constant 0 : index
    %29 = vector.load %arg8[%c0_18, %c0_19] : memref<128x128xbf16, #tpu.memory_space<vmem>>, vector<128x128xbf16>
    %cst_20 = arith.constant dense<0.000000e+00> : vector<16x128xf32>
    %30 = tpu.matmul %28, %29, %cst_20 {dimension_numbers = #tpu.dot_dimension_numbers<[1], [0], [0], [1], [0, 0, 1, 1], [], []>} : vector<16x128xbf16>, vector<128x128xbf16>, vector<16x128xf32> -> vector<16x128xf32>
    %c0_21 = arith.constant 0 : index
    %c0_22 = arith.constant 0 : index
    %31 = vector.load %arg9[%c0_21, %c0_22] : memref<1x128xf32, #tpu.memory_space<vmem>>, vector<1x128xf32>
    %32 = vector.broadcast %31 : vector<1x128xf32> to vector<16x128xf32>
    %33 = arith.addf %30, %32 : vector<16x128xf32>
    %cst_23 = arith.constant dense<0xFF800000> : vector<16xf32>
    %34 = vector.multi_reduction <maximumf>, %33, %cst_23 [1] : vector<16x128xf32> to vector<16xf32>
    %35 = vector.shape_cast %34 : vector<16xf32> to vector<16x1xf32>
    %36 = vector.broadcast %35 : vector<16x1xf32> to vector<16x128xf32>
    %37 = arith.subf %33, %36 : vector<16x128xf32>
    %38 = math.exp %37 : vector<16x128xf32>
    %cst_24 = arith.constant dense<0.000000e+00> : vector<16xf32>
    %39 = vector.multi_reduction <add>, %38, %cst_24 [1] : vector<16x128xf32> to vector<16xf32>
    %40 = vector.shape_cast %39 : vector<16xf32> to vector<16x1xf32>
    %41 = math.log %40 : vector<16x1xf32>
    %42 = vector.broadcast %41 : vector<16x1xf32> to vector<16x128xf32>
    %43 = arith.subf %37, %42 : vector<16x128xf32>
    %44 = arith.truncf %43 : vector<16x128xf32> to vector<16x128xbf16>
    %c0_25 = arith.constant 0 : index
    %c0_26 = arith.constant 0 : index
    %45 = vector.load %arg10[%c0_25, %c0_26] : memref<16x128xbf16, #tpu.memory_space<vmem>>, vector<16x128xbf16>
    tpu.vector_store %arg10[%c0_25, %c0_26], %44 {strides = array<i32>} : memref<16x128xbf16, #tpu.memory_space<vmem>>, vector<16x128xbf16>,
    return
  }
  func.func @transform_0(%arg0: i32) -> (i32, i32) {
    %c0_i32 = arith.constant 0 : i32
    %c0_i32_0 = arith.constant 0 : i32
    return %arg0, %c0_i32 : i32, i32
  }
  func.func @transform_1(%arg0: i32) -> (i32, i32) {
    %c0_i32 = arith.constant 0 : i32
    %c0_i32_0 = arith.constant 0 : i32
    %c0_i32_1 = arith.constant 0 : i32
    return %c0_i32, %c0_i32_0 : i32, i32
  }
  func.func @transform_2(%arg0: i32) -> (i32, i32) {
    %c0_i32 = arith.constant 0 : i32
    %c0_i32_0 = arith.constant 0 : i32
    %c0_i32_1 = arith.constant 0 : i32
    return %c0_i32, %c0_i32_0 : i32, i32
  }
  func.func @transform_3(%arg0: i32) -> (i32, i32) {
    %c0_i32 = arith.constant 0 : i32
    %c0_i32_0 = arith.constant 0 : i32
    %c0_i32_1 = arith.constant 0 : i32
    return %c0_i32, %c0_i32_0 : i32, i32
  }
  func.func @transform_4(%arg0: i32) -> (i32, i32) {
    %c0_i32 = arith.constant 0 : i32
    %c0_i32_0 = arith.constant 0 : i32
    %c0_i32_1 = arith.constant 0 : i32
    return %c0_i32, %c0_i32_0 : i32, i32
  }
  func.func @transform_5(%arg0: i32) -> (i32, i32) {
    %c0_i32 = arith.constant 0 : i32
    %c0_i32_0 = arith.constant 0 : i32
    %c0_i32_1 = arith.constant 0 : i32
    return %c0_i32, %c0_i32_0 : i32, i32
  }
  func.func @transform_6(%arg0: i32) -> (i32, i32) {
    %c0_i32 = arith.constant 0 : i32
    %c0_i32_0 = arith.constant 0 : i32
    %c0_i32_1 = arith.constant 0 : i32
    return %c0_i32, %c0_i32_0 : i32, i32
  }
  func.func @transform_7(%arg0: i32) -> (i32, i32) {
    %c0_i32 = arith.constant 0 : i32
    %c0_i32_0 = arith.constant 0 : i32
    %c0_i32_1 = arith.constant 0 : i32
    return %c0_i32, %c0_i32_0 : i32, i32
  }
  func.func @transform_8(%arg0: i32) -> (i32, i32) {
    %c0_i32 = arith.constant 0 : i32
    %c0_i32_0 = arith.constant 0 : i32
    %c0_i32_1 = arith.constant 0 : i32
    return %c0_i32, %c0_i32_0 : i32, i32
  }
  func.func @transform_9(%arg0: i32) -> (i32, i32) {
    %c0_i32 = arith.constant 0 : i32
    %c0_i32_0 = arith.constant 0 : i32
    return %arg0, %c0_i32 : i32, i32
  }
}

</mosaic_0001>

<llo_original>
// kernel: qfourview_forward.1
$region0: #{qfourview_forward.1}
  #allocation0 [shape = 'u32[]', space=smem, size = 0x4, offset = 0x4, fixed_abs, tag = 'smem constant byte address 0x4 - core index']
  #allocation1 [shape = 'u32[72,128]{1,0:T(1,128)}', space=vmem, size = 0x9000, scoped, tag = 'internal scratch']
  %s0 = inlined_call_operand.vmem [shape: f32[16,784], index: 0, kind: input, shape index: {}]
  %s1 = inlined_call_operand.hbm [shape: bf16[784,512], index: 1, kind: input, shape index: {}]
  %s2 = inlined_call_operand.vmem [shape: f32[1,512], index: 2, kind: input, shape index: {}]
  %s3 = inlined_call_operand.vmem [shape: bf16[512,128], index: 3, kind: input, shape index: {}]
  %s4 = inlined_call_operand.vmem [shape: f32[1,128], index: 4, kind: input, shape index: {}]
  %s5 = inlined_call_operand.vmem [shape: bf16[128,128], index: 5, kind: input, shape index: {}]
  %s6 = inlined_call_operand.vmem [shape: f32[1,128], index: 6, kind: input, shape index: {}]
  %s7 = inlined_call_operand.hbm [shape: bf16[128,128], index: 7, kind: input, shape index: {}]
  %s8 = inlined_call_operand.vmem [shape: f32[1,128], index: 8, kind: input, shape index: {}]
  %s9 = inlined_call_operand.vmem [shape: bf16[16,128], index: 9, kind: output, shape index: {}]
  %s10 = sld [smem:[#allocation0]]
  $region54: #{qfourview_forward.1} parent=0
    _
  %s12 = ssub.s32 1, %s10
  %s13 = scalar_select 0, %s12, %s10
  $region1: #{qfourview_forward.1} parent=0
    #allocation2 [shape = 'u8[802816]{0}', space=vmem, size = 0xc4000, scoped, tag = 'input window, operand 1, single buffered']
    #allocation3 [shape = 's32[1]{0}', space=sflag, size = 0x4, scoped, tag = 'scoped memory for qfourview_forward.1']
    #allocation4 [shape = 'u8[32768]{0}', space=vmem, size = 0x8000, scoped, tag = 'input window, operand 7, single buffered']
    #allocation5 [shape = 's32[1]{0}', space=sflag, size = 0x4, scoped, tag = 'scoped memory for qfourview_forward.1']
    %14 = vsyncpa [#allocation3], 0
    %15 = vsyncpa [#allocation5], 0
    // Predicated region
    $region2: #{qfourview_forward.1} parent=1 // pred_check
      _
    $region3: #{qfourview_forward.1} parent=1 // pred_check_branch
      %17 = sbr.rel (0) target = $region5
    $region4: #{qfourview_forward.1} parent=1 // pred_region
      _
    $region5: #{qfourview_forward.1} parent=1 // pred_fallthru
      _
    // Predicated region
    $region6: #{qfourview_forward.1} parent=1 // pred_check
      _
    $region7: #{qfourview_forward.1} parent=1 // pred_check_branch
      %19 = sbr.rel (0) target = $region9
    $region8: #{qfourview_forward.1} parent=1 // pred_region
      %21 = vsyncadd [#allocation3], 0
      %s22 = sshll.u32 %s1, 4
      %s23 = int_to_ptr.hbm [resolvable:$true] %s22
      %s24 = sshll.u32 [#allocation2], 4
      %s25 = int_to_ptr.vmem [resolvable:$true] %s24
      %30 = dma.hbm_to_vmem [thread:$0]  %s23, 25088, %s25, [#allocation3], 256, 256, 16
    $region9: #{qfourview_forward.1} parent=1 // pred_fallthru
      _
    // Predicated region
    $region10: #{qfourview_forward.1} parent=1 // pred_check
      _
    $region11: #{qfourview_forward.1} parent=1 // pred_check_branch
      %32 = sbr.rel (0) target = $region13
    $region12: #{qfourview_forward.1} parent=1 // pred_region
      _
    $region13: #{qfourview_forward.1} parent=1 // pred_fallthru
      _
    // Predicated region
    $region14: #{qfourview_forward.1} parent=1 // pred_check
      _
    $region15: #{qfourview_forward.1} parent=1 // pred_check_branch
      %34 = sbr.rel (0) target = $region17
    $region16: #{qfourview_forward.1} parent=1 // pred_region
      _
    $region17: #{qfourview_forward.1} parent=1 // pred_fallthru
      _
    // Predicated region
    $region18: #{qfourview_forward.1} parent=1 // pred_check
      _
    $region19: #{qfourview_forward.1} parent=1 // pred_check_branch
      %36 = sbr.rel (0) target = $region21
    $region20: #{qfourview_forward.1} parent=1 // pred_region
      _
    $region21: #{qfourview_forward.1} parent=1 // pred_fallthru
      _
    // Predicated region
    $region22: #{qfourview_forward.1} parent=1 // pred_check
      _
    $region23: #{qfourview_forward.1} parent=1 // pred_check_branch
      %38 = sbr.rel (0) target = $region25
    $region24: #{qfourview_forward.1} parent=1 // pred_region
      _
    $region25: #{qfourview_forward.1} parent=1 // pred_fallthru
      _
    // Predicated region
    $region26: #{qfourview_forward.1} parent=1 // pred_check
      _
    $region27: #{qfourview_forward.1} parent=1 // pred_check_branch
      %40 = sbr.rel (0) target = $region29
    $region28: #{qfourview_forward.1} parent=1 // pred_region
      _
    $region29: #{qfourview_forward.1} parent=1 // pred_fallthru
      _
    // Predicated region
    $region30: #{qfourview_forward.1} parent=1 // pred_check
      _
    $region31: #{qfourview_forward.1} parent=1 // pred_check_branch
      %42 = sbr.rel (0) target = $region33
    $region32: #{qfourview_forward.1} parent=1 // pred_region
      %44 = vsyncadd [#allocation5], 0
      %s45 = sshll.u32 %s7, 4
      %s46 = int_to_ptr.hbm [resolvable:$true] %s45
      %s47 = sshll.u32 [#allocation4], 4
      %s48 = int_to_ptr.vmem [resolvable:$true] %s47
      %53 = dma.hbm_to_vmem [thread:$0]  %s46, 1024, %s48, [#allocation5], 64, 64, 4
    $region33: #{qfourview_forward.1} parent=1 // pred_fallthru
      _
    // Predicated region
    $region34: #{qfourview_forward.1} parent=1 // pred_check
      _
    $region35: #{qfourview_forward.1} parent=1 // pred_check_branch
      %55 = sbr.rel (0) target = $region37
    $region36: #{qfourview_forward.1} parent=1 // pred_region
      _
    $region37: #{qfourview_forward.1} parent=1 // pred_fallthru
      _
    // Predicated region
    $region38: #{qfourview_forward.1} parent=1 // pred_check
      _
    $region39: #{qfourview_forward.1} parent=1 // pred_check_branch
      %57 = sbr.rel (0) target = $region41
    $region40: #{qfourview_forward.1} parent=1 // pred_region
      %59 = dma.done [#allocation3], 25088
    $region41: #{qfourview_forward.1} parent=1 // pred_fallthru
      _
    // Predicated region
    $region42: #{qfourview_forward.1} parent=1 // pred_check
      _
    $region43: #{qfourview_forward.1} parent=1 // pred_check_branch
      %61 = sbr.rel (0) target = $region45
    $region44: #{qfourview_forward.1} parent=1 // pred_region
      %63 = dma.done [#allocation5], 1024
    $region45: #{qfourview_forward.1} parent=1 // pred_fallthru
      _
    %v65 = vld [vmem:[%s0] sm:$0xff]
    %v66 = vld [vmem:[%s0 + $0x8] sm:$0xff]
    %v67 = vld [vmem:[%s0 + $0x10] sm:$0xff]
    %v68 = vld [vmem:[%s0 + $0x18] sm:$0xff]
    %v69 = vld [vmem:[%s0 + $0x20] sm:$0xff]
    %v70 = vld [vmem:[%s0 + $0x28] sm:$0xff]
    %v71 = vld [vmem:[%s0 + $0x30] sm:$0xff]
    %v72 = vld [vmem:[%s0 + $0x38] sm:$0xff]
    %v73 = vld [vmem:[%s0 + $0x40] sm:$0xff]
    %v74 = vld [vmem:[%s0 + $0x48] sm:$0xff]
    %v75 = vld [vmem:[%s0 + $0x50] sm:$0xff]
    %v76 = vld [vmem:[%s0 + $0x58] sm:$0xff]
    %v77 = vld [vmem:[%s0 + $0x60] sm:$0xff]
    %v78 = vld [vmem:[%s0 + $0x68] sm:$0xff]
    %v79 = vpack.c.bf16 %v72, %v65
    %v80 = vpack.c.bf16 %v73, %v66
    %v81 = vpack.c.bf16 %v74, %v67
    %v82 = vpack.c.bf16 %v75, %v68
    %v83 = vpack.c.bf16 %v76, %v69
    %v84 = vpack.c.bf16 %v77, %v70
    %v85 = vpack.c.bf16 %v78, %v71
    %v86 = vld [vmem:[#allocation2] sm:$0xff]
    %v87 = vld [vmem:[#allocation2 + $0x8] sm:$0xff]
    %v88 = vld [vmem:[#allocation2 + $0x10] sm:$0xff]
    %v89 = vld [vmem:[#allocation2 + $0x18] sm:$0xff]
    %v90 = vld [vmem:[#allocation2 + $0x20] sm:$0xff]
    %v91 = vld [vmem:[#allocation2 + $0x28] sm:$0xff]
    %v92 = vld [vmem:[#allocation2 + $0x30] sm:$0xff]
    %v93 = vld [vmem:[#allocation2 + $0x38] sm:$0xff]
    %v94 = vld [vmem:[#allocation2 + $0x40] sm:$0xff]
    %v95 = vld [vmem:[#allocation2 + $0x48] sm:$0xff]
    %v96 = vld [vmem:[#allocation2 + $0x50] sm:$0xff]
    %v97 = vld [vmem:[#allocation2 + $0x58] sm:$0xff]
    %v98 = vld [vmem:[#allocation2 + $0x60] sm:$0xff]
    %v99 = vld [vmem:[#allocation2 + $0x68] sm:$0xff]
    %v100 = vld [vmem:[#allocation2 + $0x70] sm:$0xff]
    %v101 = vld [vmem:[#allocation2 + $0x78] sm:$0xff]
    %v102 = vld [vmem:[#allocation2 + $0x80] sm:$0xff]
    %v103 = vld [vmem:[#allocation2 + $0x88] sm:$0xff]
    %v104 = vld [vmem:[#allocation2 + $0x90] sm:$0xff]
    %v105 = vld [vmem:[#allocation2 + $0x98] sm:$0xff]
    %v106 = vld [vmem:[#allocation2 + $0xa0] sm:$0xff]
    %v107 = vld [vmem:[#allocation2 + $0xa8] sm:$0xff]
    %v108 = vld [vmem:[#allocation2 + $0xb0] sm:$0xff]
    %v109 = vld [vmem:[#allocation2 + $0xb8] sm:$0xff]
    %v110 = vld [vmem:[#allocation2 + $0xc0] sm:$0xff]
    %v111 = vld [vmem:[#allocation2 + $0xc8] sm:$0xff]
    %v112 = vld [vmem:[#allocation2 + $0xd0] sm:$0xff]
    %v113 = vld [vmem:[#allocation2 + $0xd8] sm:$0xff]
    %v114 = vld [vmem:[#allocation2 + $0xe0] sm:$0xff]
    %v115 = vld [vmem:[#allocation2 + $0xe8] sm:$0xff]
    %v116 = vld [vmem:[#allocation2 + $0xf0] sm:$0xff]
    %v117 = vld [vmem:[#allocation2 + $0xf8] sm:$0xff]
    %v118 = vld [vmem:[#allocation2 + $0x100] sm:$0xff]
    %v119 = vld [vmem:[#allocation2 + $0x108] sm:$0xff]
    %v120 = vld [vmem:[#allocation2 + $0x110] sm:$0xff]
    %v121 = vld [vmem:[#allocation2 + $0x118] sm:$0xff]
    %v122 = vld [vmem:[#allocation2 + $0x120] sm:$0xff]
    %v123 = vld [vmem:[#allocation2 + $0x128] sm:$0xff]
    %v124 = vld [vmem:[#allocation2 + $0x130] sm:$0xff]
    %v125 = vld [vmem:[#allocation2 + $0x138] sm:$0xff]
    %v126 = vld [vmem:[#allocation2 + $0x140] sm:$0xff]
    %v127 = vld [vmem:[#allocation2 + $0x148] sm:$0xff]
    %v128 = vld [vmem:[#allocation2 + $0x150] sm:$0xff]
    %v129 = vld [vmem:[#allocation2 + $0x158] sm:$0xff]
    %v130 = vld [vmem:[#allocation2 + $0x160] sm:$0xff]
    %v131 = vld [vmem:[#allocation2 + $0x168] sm:$0xff]
    %v132 = vld [vmem:[#allocation2 + $0x170] sm:$0xff]
    %v133 = vld [vmem:[#allocation2 + $0x178] sm:$0xff]
    %v134 = vld [vmem:[#allocation2 + $0x180] sm:$0xff]
    %v135 = vld [vmem:[#allocation2 + $0x188] sm:$0xff]
    %v136 = vld [vmem:[#allocation2 + $0x190] sm:$0xff]
    %v137 = vld [vmem:[#allocation2 + $0x198] sm:$0xff]
    %v138 = vld [vmem:[#allocation2 + $0x1a0] sm:$0xff]
    %v139 = vld [vmem:[#allocation2 + $0x1a8] sm:$0xff]
    %v140 = vld [vmem:[#allocation2 + $0x1b0] sm:$0xff]
    %v141 = vld [vmem:[#allocation2 + $0x1b8] sm:$0xff]
    %v142 = vld [vmem:[#allocation2 + $0x1c0] sm:$0xff]
    %v143 = vld [vmem:[#allocation2 + $0x1c8] sm:$0xff]
    %v144 = vld [vmem:[#allocation2 + $0x1d0] sm:$0xff]
    %v145 = vld [vmem:[#allocation2 + $0x1d8] sm:$0xff]
    %v146 = vld [vmem:[#allocation2 + $0x1e0] sm:$0xff]
    %v147 = vld [vmem:[#allocation2 + $0x1e8] sm:$0xff]
    %v148 = vld [vmem:[#allocation2 + $0x1f0] sm:$0xff]
    %v149 = vld [vmem:[#allocation2 + $0x1f8] sm:$0xff]
    %v150 = vld [vmem:[#allocation2 + $0x200] sm:$0xff]
    %v151 = vld [vmem:[#allocation2 + $0x208] sm:$0xff]
    %v152 = vld [vmem:[#allocation2 + $0x210] sm:$0xff]
    %v153 = vld [vmem:[#allocation2 + $0x218] sm:$0xff]
    %v154 = vld [vmem:[#allocation2 + $0x220] sm:$0xff]
    %v155 = vld [vmem:[#allocation2 + $0x228] sm:$0xff]
    %v156 = vld [vmem:[#allocation2 + $0x230] sm:$0xff]
    %v157 = vld [vmem:[#allocation2 + $0x238] sm:$0xff]
    %v158 = vld [vmem:[#allocation2 + $0x240] sm:$0xff]
    %v159 = vld [vmem:[#allocation2 + $0x248] sm:$0xff]
    %v160 = vld [vmem:[#allocation2 + $0x250] sm:$0xff]
    %v161 = vld [vmem:[#allocation2 + $0x258] sm:$0xff]
    %v162 = vld [vmem:[#allocation2 + $0x260] sm:$0xff]
    %v163 = vld [vmem:[#allocation2 + $0x268] sm:$0xff]
    %v164 = vld [vmem:[#allocation2 + $0x270] sm:$0xff]
    %v165 = vld [vmem:[#allocation2 + $0x278] sm:$0xff]
    %v166 = vld [vmem:[#allocation2 + $0x280] sm:$0xff]
    %v167 = vld [vmem:[#allocation2 + $0x288] sm:$0xff]
    %v168 = vld [vmem:[#allocation2 + $0x290] sm:$0xff]
    %v169 = vld [vmem:[#allocation2 + $0x298] sm:$0xff]
    %v170 = vld [vmem:[#allocation2 + $0x2a0] sm:$0xff]
    %v171 = vld [vmem:[#allocation2 + $0x2a8] sm:$0xff]
    %v172 = vld [vmem:[#allocation2 + $0x2b0] sm:$0xff]
    %v173 = vld [vmem:[#allocation2 + $0x2b8] sm:$0xff]
    %v174 = vld [vmem:[#allocation2 + $0x2c0] sm:$0xff]
    %v175 = vld [vmem:[#allocation2 + $0x2c8] sm:$0xff]
    %v176 = vld [vmem:[#allocation2 + $0x2d0] sm:$0xff]
    %v177 = vld [vmem:[#allocation2 + $0x2d8] sm:$0xff]
    %v178 = vld [vmem:[#allocation2 + $0x2e0] sm:$0xff]
    %v179 = vld [vmem:[#allocation2 + $0x2e8] sm:$0xff]
    %v180 = vld [vmem:[#allocation2 + $0x2f0] sm:$0xff]
    %v181 = vld [vmem:[#allocation2 + $0x2f8] sm:$0xff]
    %v182 = vld [vmem:[#allocation2 + $0x300] sm:$0xff]
    %v183 = vld [vmem:[#allocation2 + $0x308] sm:$0xff]
    %v184 = vld [vmem:[#allocation2 + $0x310] sm:$0xff]
    %v185 = vld [vmem:[#allocation2 + $0x318] sm:$0xff]
    %v186 = vld [vmem:[#allocation2 + $0x320] sm:$0xff]
    %v187 = vld [vmem:[#allocation2 + $0x328] sm:$0xff]
    %v188 = vld [vmem:[#allocation2 + $0x330] sm:$0xff]
    %v189 = vld [vmem:[#allocation2 + $0x338] sm:$0xff]
    %v190 = vld [vmem:[#allocation2 + $0x340] sm:$0xff]
    %v191 = vld [vmem:[#allocation2 + $0x348] sm:$0xff]
    %v192 = vld [vmem:[#allocation2 + $0x350] sm:$0xff]
    %v193 = vld [vmem:[#allocation2 + $0x358] sm:$0xff]
    %v194 = vld [vmem:[#allocation2 + $0x360] sm:$0xff]
    %v195 = vld [vmem:[#allocation2 + $0x368] sm:$0xff]
    %v196 = vld [vmem:[#allocation2 + $0x370] sm:$0xff]
    %v197 = vld [vmem:[#allocation2 + $0x378] sm:$0xff]
    %v198 = vld [vmem:[#allocation2 + $0x380] sm:$0xff]
    %v199 = vld [vmem:[#allocation2 + $0x388] sm:$0xff]
    %v200 = vld [vmem:[#allocation2 + $0x390] sm:$0xff]
    %v201 = vld [vmem:[#allocation2 + $0x398] sm:$0xff]
    %v202 = vld [vmem:[#allocation2 + $0x3a0] sm:$0xff]
    %v203 = vld [vmem:[#allocation2 + $0x3a8] sm:$0xff]
    %v204 = vld [vmem:[#allocation2 + $0x3b0] sm:$0xff]
    %v205 = vld [vmem:[#allocation2 + $0x3b8] sm:$0xff]
    %v206 = vld [vmem:[#allocation2 + $0x3c0] sm:$0xff]
    %v207 = vld [vmem:[#allocation2 + $0x3c8] sm:$0xff]
    %v208 = vld [vmem:[#allocation2 + $0x3d0] sm:$0xff]
    %v209 = vld [vmem:[#allocation2 + $0x3d8] sm:$0xff]
    %v210 = vld [vmem:[#allocation2 + $0x3e0] sm:$0xff]
    %v211 = vld [vmem:[#allocation2 + $0x3e8] sm:$0xff]
    %v212 = vld [vmem:[#allocation2 + $0x3f0] sm:$0xff]
    %v213 = vld [vmem:[#allocation2 + $0x3f8] sm:$0xff]
    %v214 = vld [vmem:[#allocation2 + $0x400] sm:$0xff]
    %v215 = vld [vmem:[#allocation2 + $0x408] sm:$0xff]
    %v216 = vld [vmem:[#allocation2 + $0x410] sm:$0xff]
    %v217 = vld [vmem:[#allocation2 + $0x418] sm:$0xff]
    %v218 = vld [vmem:[#allocation2 + $0x420] sm:$0xff]
    %v219 = vld [vmem:[#allocation2 + $0x428] sm:$0xff]
    %v220 = vld [vmem:[#allocation2 + $0x430] sm:$0xff]
    %v221 = vld [vmem:[#allocation2 + $0x438] sm:$0xff]
    %v222 = vld [vmem:[#allocation2 + $0x440] sm:$0xff]
    %v223 = vld [vmem:[#allocation2 + $0x448] sm:$0xff]
    %v224 = vld [vmem:[#allocation2 + $0x450] sm:$0xff]
    %v225 = vld [vmem:[#allocation2 + $0x458] sm:$0xff]
    %v226 = vld [vmem:[#allocation2 + $0x460] sm:$0xff]
    %v227 = vld [vmem:[#allocation2 + $0x468] sm:$0xff]
    %v228 = vld [vmem:[#allocation2 + $0x470] sm:$0xff]
    %v229 = vld [vmem:[#allocation2 + $0x478] sm:$0xff]
    %v230 = vld [vmem:[#allocation2 + $0x480] sm:$0xff]
    %v231 = vld [vmem:[#allocation2 + $0x488] sm:$0xff]
    %v232 = vld [vmem:[#allocation2 + $0x490] sm:$0xff]
    %v233 = vld [vmem:[#allocation2 + $0x498] sm:$0xff]
    %v234 = vld [vmem:[#allocation2 + $0x4a0] sm:$0xff]
    %v235 = vld [vmem:[#allocation2 + $0x4a8] sm:$0xff]
    %v236 = vld [vmem:[#allocation2 + $0x4b0] sm:$0xff]
    %v237 = vld [vmem:[#allocation2 + $0x4b8] sm:$0xff]
    %v238 = vld [vmem:[#allocation2 + $0x4c0] sm:$0xff]
    %v239 = vld [vmem:[#allocation2 + $0x4c8] sm:$0xff]
    %v240 = vld [vmem:[#allocation2 + $0x4d0] sm:$0xff]
    %v241 = vld [vmem:[#allocation2 + $0x4d8] sm:$0xff]
    %v242 = vld [vmem:[#allocation2 + $0x4e0] sm:$0xff]
    %v243 = vld [vmem:[#allocation2 + $0x4e8] sm:$0xff]
    %v244 = vld [vmem:[#allocation2 + $0x4f0] sm:$0xff]
    %v245 = vld [vmem:[#allocation2 + $0x4f8] sm:$0xff]
    %v246 = vld [vmem:[#allocation2 + $0x500] sm:$0xff]
    %v247 = vld [vmem:[#allocation2 + $0x508] sm:$0xff]
    %v248 = vld [vmem:[#allocation2 + $0x510] sm:$0xff]
    %v249 = vld [vmem:[#allocation2 + $0x518] sm:$0xff]
    %v250 = vld [vmem:[#allocation2 + $0x520] sm:$0xff]
    %v251 = vld [vmem:[#allocation2 + $0x528] sm:$0xff]
    %v252 = vld [vmem:[#allocation2 + $0x530] sm:$0xff]
    %v253 = vld [vmem:[#allocation2 + $0x538] sm:$0xff]
    %v254 = vld [vmem:[#allocation2 + $0x540] sm:$0xff]
    %v255 = vld [vmem:[#allocation2 + $0x548] sm:$0xff]
    %v256 = vld [vmem:[#allocation2 + $0x550] sm:$0xff]
    %v257 = vld [vmem:[#allocation2 + $0x558] sm:$0xff]
    %v258 = vld [vmem:[#allocation2 + $0x560] sm:$0xff]
    %v259 = vld [vmem:[#allocation2 + $0x568] sm:$0xff]
    %v260 = vld [vmem:[#allocation2 + $0x570] sm:$0xff]
    %v261 = vld [vmem:[#allocation2 + $0x578] sm:$0xff]
    %v262 = vld [vmem:[#allocation2 + $0x580] sm:$0xff]
    %v263 = vld [vmem:[#allocation2 + $0x588] sm:$0xff]
    %v264 = vld [vmem:[#allocation2 + $0x590] sm:$0xff]
    %v265 = vld [vmem:[#allocation2 + $0x598] sm:$0xff]
    %v266 = vld [vmem:[#allocation2 + $0x5a0] sm:$0xff]
    %v267 = vld [vmem:[#allocation2 + $0x5a8] sm:$0xff]
    %v268 = vld [vmem:[#allocation2 + $0x5b0] sm:$0xff]
    %v269 = vld [vmem:[#allocation2 + $0x5b8] sm:$0xff]
    %v270 = vld [vmem:[#allocation2 + $0x5c0] sm:$0xff]
    %v271 = vld [vmem:[#allocation2 + $0x5c8] sm:$0xff]
    %v272 = vld [vmem:[#allocation2 + $0x5d0] sm:$0xff]
    %v273 = vld [vmem:[#allocation2 + $0x5d8] sm:$0xff]
    %v274 = vld [vmem:[#allocation2 + $0x5e0] sm:$0xff]
    %v275 = vld [vmem:[#allocation2 + $0x5e8] sm:$0xff]
    %v276 = vld [vmem:[#allocation2 + $0x5f0] sm:$0xff]
    %v277 = vld [vmem:[#allocation2 + $0x5f8] sm:$0xff]
    %v278 = vld [vmem:[#allocation2 + $0x600] sm:$0xff]
    %v279 = vld [vmem:[#allocation2 + $0x608] sm:$0xff]
    %v280 = vld [vmem:[#allocation2 + $0x610] sm:$0xff]
    %v281 = vld [vmem:[#allocation2 + $0x618] sm:$0xff]
    %v282 = vld [vmem:[%s2] sm:$0xf]
    %v284 = vperm.slane %v282, 0
    %v285 = vperm.slane %v282, 1
    %v286 = vperm.slane %v282, 2
    %v287 = vperm.slane %v282, 3
    %v488 = vunpack.c.l.b16 %v86
    %v489 = vunpack.c.h.b16 %v86
    %v490 = vunpack.c.l.b16 %v87
    %v491 = vunpack.c.h.b16 %v87
    %v492 = vunpack.c.l.b16 %v88
    %v493 = vunpack.c.h.b16 %v88
    %v494 = vunpack.c.l.b16 %v89
    %v495 = vunpack.c.h.b16 %v89
    %v496 = vunpack.c.l.b16 %v90
    %v497 = vunpack.c.h.b16 %v90
    %v498 = vunpack.c.l.b16 %v91
    %v499 = vunpack.c.h.b16 %v91
    %v500 = vunpack.c.l.b16 %v92
    %v501 = vunpack.c.h.b16 %v92
    %v502 = vunpack.c.l.b16 %v93
    %v503 = vunpack.c.h.b16 %v93
    %v504 = vunpack.c.l.b16 %v94
    %v505 = vunpack.c.h.b16 %v94
    %v506 = vunpack.c.l.b16 %v95
    %v507 = vunpack.c.h.b16 %v95
    %v508 = vunpack.c.l.b16 %v96
    %v509 = vunpack.c.h.b16 %v96
    %v510 = vunpack.c.l.b16 %v97
    %v511 = vunpack.c.h.b16 %v97
    %v512 = vunpack.c.l.b16 %v98
    %v513 = vunpack.c.h.b16 %v98
    %v514 = vunpack.c.l.b16 %v99
    %v515 = vunpack.c.h.b16 %v99
    %v516 = vunpack.c.l.b16 %v100
    %v517 = vunpack.c.h.b16 %v100
    %v518 = vunpack.c.l.b16 %v101
    %v519 = vunpack.c.h.b16 %v101
    %v520 = vunpack.c.l.b16 %v102
    %v521 = vunpack.c.h.b16 %v102
    %v522 = vunpack.c.l.b16 %v103
    %v523 = vunpack.c.h.b16 %v103
    %v524 = vunpack.c.l.b16 %v104
    %v525 = vunpack.c.h.b16 %v104
    %v526 = vunpack.c.l.b16 %v105
    %v527 = vunpack.c.h.b16 %v105
    %v528 = vunpack.c.l.b16 %v106
    %v529 = vunpack.c.h.b16 %v106
    %v530 = vunpack.c.l.b16 %v107
    %v531 = vunpack.c.h.b16 %v107
    %v532 = vunpack.c.l.b16 %v108
    %v533 = vunpack.c.h.b16 %v108
    %v534 = vunpack.c.l.b16 %v109
    %v535 = vunpack.c.h.b16 %v109
    %v536 = vunpack.c.l.b16 %v110
    %v537 = vunpack.c.h.b16 %v110
    %v538 = vunpack.c.l.b16 %v111
    %v539 = vunpack.c.h.b16 %v111
    %v540 = vunpack.c.l.b16 %v112
    %v541 = vunpack.c.h.b16 %v112
    %v542 = vunpack.c.l.b16 %v113
    %v543 = vunpack.c.h.b16 %v113
    %v544 = vunpack.c.l.b16 %v114
    %v545 = vunpack.c.h.b16 %v114
    %v546 = vunpack.c.l.b16 %v115
    %v547 = vunpack.c.h.b16 %v115
    %v548 = vunpack.c.l.b16 %v116
    %v549 = vunpack.c.h.b16 %v116
    %v550 = vunpack.c.l.b16 %v117
    %v551 = vunpack.c.h.b16 %v117
    %v552 = vunpack.c.l.b16 %v118
    %v553 = vunpack.c.h.b16 %v118
    %v554 = vunpack.c.l.b16 %v119
    %v555 = vunpack.c.h.b16 %v119
    %v556 = vunpack.c.l.b16 %v120
    %v557 = vunpack.c.h.b16 %v120
    %v558 = vunpack.c.l.b16 %v121
    %v559 = vunpack.c.h.b16 %v121
    %v560 = vunpack.c.l.b16 %v122
    %v561 = vunpack.c.h.b16 %v122
    %v562 = vunpack.c.l.b16 %v123
    %v563 = vunpack.c.h.b16 %v123
    %v564 = vunpack.c.l.b16 %v124
    %v565 = vunpack.c.h.b16 %v124
    %v566 = vunpack.c.l.b16 %v125
    %v567 = vunpack.c.h.b16 %v125
    %v568 = vunpack.c.l.b16 %v126
    %v569 = vunpack.c.h.b16 %v126
    %v570 = vunpack.c.l.b16 %v127
    %v571 = vunpack.c.h.b16 %v127
    %v572 = vunpack.c.l.b16 %v128
    %v573 = vunpack.c.h.b16 %v128
    %v574 = vunpack.c.l.b16 %v129
    %v575 = vunpack.c.h.b16 %v129
    %v576 = vunpack.c.l.b16 %v130
    %v577 = vunpack.c.h.b16 %v130
    %v578 = vunpack.c.l.b16 %v131
    %v579 = vunpack.c.h.b16 %v131
    %v580 = vunpack.c.l.b16 %v132
    %v581 = vunpack.c.h.b16 %v132
    %v582 = vunpack.c.l.b16 %v133
    %v583 = vunpack.c.h.b16 %v133
    %v584 = vunpack.c.l.b16 %v134
    %v585 = vunpack.c.h.b16 %v134
    %v586 = vunpack.c.l.b16 %v135
    %v587 = vunpack.c.h.b16 %v135
    %v588 = vunpack.c.l.b16 %v136
    %v589 = vunpack.c.h.b16 %v136
    %v590 = vunpack.c.l.b16 %v137
    %v591 = vunpack.c.h.b16 %v137
    %v592 = vunpack.c.l.b16 %v138
    %v593 = vunpack.c.h.b16 %v138
    %v594 = vunpack.c.l.b16 %v139
    %v595 = vunpack.c.h.b16 %v139
    %v596 = vunpack.c.l.b16 %v140
    %v597 = vunpack.c.h.b16 %v140
    %v598 = vunpack.c.l.b16 %v141
    %v599 = vunpack.c.h.b16 %v141
    %v600 = vunpack.c.l.b16 %v142
    %v601 = vunpack.c.h.b16 %v142
    %v602 = vunpack.c.l.b16 %v143
    %v603 = vunpack.c.h.b16 %v143
    %v604 = vunpack.c.l.b16 %v144
    %v605 = vunpack.c.h.b16 %v144
    %v606 = vunpack.c.l.b16 %v145
    %v607 = vunpack.c.h.b16 %v145
    %v608 = vunpack.c.l.b16 %v146
    %v609 = vunpack.c.h.b16 %v146
    %v610 = vunpack.c.l.b16 %v147
    %v611 = vunpack.c.h.b16 %v147
    %v612 = vunpack.c.l.b16 %v148
    %v613 = vunpack.c.h.b16 %v148
    %v614 = vunpack.c.l.b16 %v149
    %v615 = vunpack.c.h.b16 %v149
    %v616 = vunpack.c.l.b16 %v150
    %v617 = vunpack.c.h.b16 %v150
    %v618 = vunpack.c.l.b16 %v151
    %v619 = vunpack.c.h.b16 %v151
    %v620 = vunpack.c.l.b16 %v152
    %v621 = vunpack.c.h.b16 %v152
    %v622 = vunpack.c.l.b16 %v153
    %v623 = vunpack.c.h.b16 %v153
    %v624 = vunpack.c.l.b16 %v154
    %v625 = vunpack.c.h.b16 %v154
    %v626 = vunpack.c.l.b16 %v155
    %v627 = vunpack.c.h.b16 %v155
    %v628 = vunpack.c.l.b16 %v156
    %v629 = vunpack.c.h.b16 %v156
    %v630 = vunpack.c.l.b16 %v157
    %v631 = vunpack.c.h.b16 %v157
    %v632 = vunpack.c.l.b16 %v158
    %v633 = vunpack.c.h.b16 %v158
    %v634 = vunpack.c.l.b16 %v159
    %v635 = vunpack.c.h.b16 %v159
    %v636 = vunpack.c.l.b16 %v160
    %v637 = vunpack.c.h.b16 %v160
    %v638 = vunpack.c.l.b16 %v161
    %v639 = vunpack.c.h.b16 %v161
    %v640 = vunpack.c.l.b16 %v162
    %v641 = vunpack.c.h.b16 %v162
    %v642 = vunpack.c.l.b16 %v163
    %v643 = vunpack.c.h.b16 %v163
    %v644 = vunpack.c.l.b16 %v164
    %v645 = vunpack.c.h.b16 %v164
    %v646 = vunpack.c.l.b16 %v165
    %v647 = vunpack.c.h.b16 %v165
    %v648 = vunpack.c.l.b16 %v166
    %v649 = vunpack.c.h.b16 %v166
    %v650 = vunpack.c.l.b16 %v167
    %v651 = vunpack.c.h.b16 %v167
    %v652 = vunpack.c.l.b16 %v168
    %v653 = vunpack.c.h.b16 %v168
    %v654 = vunpack.c.l.b16 %v169
    %v655 = vunpack.c.h.b16 %v169
    %v656 = vunpack.c.l.b16 %v170
    %v657 = vunpack.c.h.b16 %v170
    %v658 = vunpack.c.l.b16 %v171
    %v659 = vunpack.c.h.b16 %v171
    %v660 = vunpack.c.l.b16 %v172
    %v661 = vunpack.c.h.b16 %v172
    %v662 = vunpack.c.l.b16 %v173
    %v663 = vunpack.c.h.b16 %v173
    %v664 = vunpack.c.l.b16 %v174
    %v665 = vunpack.c.h.b16 %v174
    %v666 = vunpack.c.l.b16 %v175
    %v667 = vunpack.c.h.b16 %v175
    %v668 = vunpack.c.l.b16 %v176
    %v669 = vunpack.c.h.b16 %v176
    %v670 = vunpack.c.l.b16 %v177
    %v671 = vunpack.c.h.b16 %v177
    %v672 = vunpack.c.l.b16 %v178
    %v673 = vunpack.c.h.b16 %v178
    %v674 = vunpack.c.l.b16 %v179
    %v675 = vunpack.c.h.b16 %v179
    %v676 = vunpack.c.l.b16 %v180
    %v677 = vunpack.c.h.b16 %v180
    %v678 = vunpack.c.l.b16 %v181
    %v679 = vunpack.c.h.b16 %v181
    %v680 = vunpack.c.l.b16 %v182
    %v681 = vunpack.c.h.b16 %v182
    %v682 = vunpack.c.l.b16 %v183
    %v683 = vunpack.c.h.b16 %v183
    %v684 = vunpack.c.l.b16 %v184
    %v685 = vunpack.c.h.b16 %v184
    %v686 = vunpack.c.l.b16 %v185
    %v687 = vunpack.c.h.b16 %v185
    %v688 = vunpack.c.l.b16 %v186
    %v689 = vunpack.c.h.b16 %v186
    %v690 = vunpack.c.l.b16 %v187
    %v691 = vunpack.c.h.b16 %v187
    %v692 = vunpack.c.l.b16 %v188
    %v693 = vunpack.c.h.b16 %v188
    %v694 = vunpack.c.l.b16 %v189
    %v695 = vunpack.c.h.b16 %v189
    %v696 = vunpack.c.l.b16 %v190
    %v697 = vunpack.c.h.b16 %v190
    %v698 = vunpack.c.l.b16 %v191
    %v699 = vunpack.c.h.b16 %v191
    %v700 = vunpack.c.l.b16 %v192
    %v701 = vunpack.c.h.b16 %v192
    %v702 = vunpack.c.l.b16 %v193
    %v703 = vunpack.c.h.b16 %v193
    %v704 = vunpack.c.l.b16 %v194
    %v705 = vunpack.c.h.b16 %v194
    %v706 = vunpack.c.l.b16 %v195
    %v707 = vunpack.c.h.b16 %v195
    %v708 = vunpack.c.l.b16 %v196
    %v709 = vunpack.c.h.b16 %v196
    %v710 = vunpack.c.l.b16 %v197
    %v711 = vunpack.c.h.b16 %v197
    %v712 = vunpack.c.l.b16 %v198
    %v713 = vunpack.c.h.b16 %v198
    %v714 = vunpack.c.l.b16 %v199
    %v715 = vunpack.c.h.b16 %v199
    %v716 = vunpack.c.l.b16 %v200
    %v717 = vunpack.c.h.b16 %v200
    %v718 = vunpack.c.l.b16 %v201
    %v719 = vunpack.c.h.b16 %v201
    %v720 = vunpack.c.l.b16 %v202
    %v721 = vunpack.c.h.b16 %v202
    %v722 = vunpack.c.l.b16 %v203
    %v723 = vunpack.c.h.b16 %v203
    %v724 = vunpack.c.l.b16 %v204
    %v725 = vunpack.c.h.b16 %v204
    %v726 = vunpack.c.l.b16 %v205
    %v727 = vunpack.c.h.b16 %v205
    %v728 = vunpack.c.l.b16 %v206
    %v729 = vunpack.c.h.b16 %v206
    %v730 = vunpack.c.l.b16 %v207
    %v731 = vunpack.c.h.b16 %v207
    %v732 = vunpack.c.l.b16 %v208
    %v733 = vunpack.c.h.b16 %v208
    %v734 = vunpack.c.l.b16 %v209
    %v735 = vunpack.c.h.b16 %v209
    %v736 = vunpack.c.l.b16 %v210
    %v737 = vunpack.c.h.b16 %v210
    %v738 = vunpack.c.l.b16 %v211
    %v739 = vunpack.c.h.b16 %v211
    %v740 = vunpack.c.l.b16 %v212
    %v741 = vunpack.c.h.b16 %v212
    %v742 = vunpack.c.l.b16 %v213
    %v743 = vunpack.c.h.b16 %v213
    %v744 = vunpack.c.l.b16 %v214
    %v745 = vunpack.c.h.b16 %v214
    %v746 = vunpack.c.l.b16 %v215
    %v747 = vunpack.c.h.b16 %v215
    %v748 = vunpack.c.l.b16 %v216
    %v749 = vunpack.c.h.b16 %v216
    %v750 = vunpack.c.l.b16 %v217
    %v751 = vunpack.c.h.b16 %v217
    %v752 = vunpack.c.l.b16 %v218
    %v753 = vunpack.c.h.b16 %v218
    %v754 = vunpack.c.l.b16 %v219
    %v755 = vunpack.c.h.b16 %v219
    %v756 = vunpack.c.l.b16 %v220
    %v757 = vunpack.c.h.b16 %v220
    %v758 = vunpack.c.l.b16 %v221
    %v759 = vunpack.c.h.b16 %v221
    %v760 = vunpack.c.l.b16 %v222
    %v761 = vunpack.c.h.b16 %v222
    %v762 = vunpack.c.l.b16 %v223
    %v763 = vunpack.c.h.b16 %v223
    %v764 = vunpack.c.l.b16 %v224
    %v765 = vunpack.c.h.b16 %v224
    %v766 = vunpack.c.l.b16 %v225
    %v767 = vunpack.c.h.b16 %v225
    %v768 = vunpack.c.l.b16 %v226
    %v769 = vunpack.c.h.b16 %v226
    %v770 = vunpack.c.l.b16 %v227
    %v771 = vunpack.c.h.b16 %v227
    %v772 = vunpack.c.l.b16 %v228
    %v773 = vunpack.c.h.b16 %v228
    %v774 = vunpack.c.l.b16 %v229
    %v775 = vunpack.c.h.b16 %v229
    %v776 = vunpack.c.l.b16 %v230
    %v777 = vunpack.c.h.b16 %v230
    %v778 = vunpack.c.l.b16 %v231
    %v779 = vunpack.c.h.b16 %v231
    %v780 = vunpack.c.l.b16 %v232
    %v781 = vunpack.c.h.b16 %v232
    %v782 = vunpack.c.l.b16 %v233
    %v783 = vunpack.c.h.b16 %v233
    %v784 = vunpack.c.l.b16 %v234
    %v785 = vunpack.c.h.b16 %v234
    %v786 = vunpack.c.l.b16 %v235
    %v787 = vunpack.c.h.b16 %v235
    %v788 = vunpack.c.l.b16 %v236
    %v789 = vunpack.c.h.b16 %v236
    %v790 = vunpack.c.l.b16 %v237
    %v791 = vunpack.c.h.b16 %v237
    %v792 = vunpack.c.l.b16 %v238
    %v793 = vunpack.c.h.b16 %v238
    %v794 = vunpack.c.l.b16 %v239
    %v795 = vunpack.c.h.b16 %v239
    %v796 = vunpack.c.l.b16 %v240
    %v797 = vunpack.c.h.b16 %v240
    %v798 = vunpack.c.l.b16 %v241
    %v799 = vunpack.c.h.b16 %v241
    %v800 = vunpack.c.l.b16 %v242
    %v801 = vunpack.c.h.b16 %v242
    %v802 = vunpack.c.l.b16 %v243
    %v803 = vunpack.c.h.b16 %v243
    %v804 = vunpack.c.l.b16 %v244
    %v805 = vunpack.c.h.b16 %v244
    %v806 = vunpack.c.l.b16 %v245
    %v807 = vunpack.c.h.b16 %v245
    %v808 = vunpack.c.l.b16 %v246
    %v809 = vunpack.c.h.b16 %v246
    %v810 = vunpack.c.l.b16 %v247
    %v811 = vunpack.c.h.b16 %v247
    %v812 = vunpack.c.l.b16 %v248
    %v813 = vunpack.c.h.b16 %v248
    %v814 = vunpack.c.l.b16 %v249
    %v815 = vunpack.c.h.b16 %v249
    %v816 = vunpack.c.l.b16 %v250
    %v817 = vunpack.c.h.b16 %v250
    %v818 = vunpack.c.l.b16 %v251
    %v819 = vunpack.c.h.b16 %v251
    %v820 = vunpack.c.l.b16 %v252
    %v821 = vunpack.c.h.b16 %v252
    %v822 = vunpack.c.l.b16 %v253
    %v823 = vunpack.c.h.b16 %v253
    %v824 = vunpack.c.l.b16 %v254
    %v825 = vunpack.c.h.b16 %v254
    %v826 = vunpack.c.l.b16 %v255
    %v827 = vunpack.c.h.b16 %v255
    %v828 = vunpack.c.l.b16 %v256
    %v829 = vunpack.c.h.b16 %v256
    %v830 = vunpack.c.l.b16 %v257
    %v831 = vunpack.c.h.b16 %v257
    %v832 = vunpack.c.l.b16 %v258
    %v833 = vunpack.c.h.b16 %v258
    %v834 = vunpack.c.l.b16 %v259
    %v835 = vunpack.c.h.b16 %v259
    %v836 = vunpack.c.l.b16 %v260
    %v837 = vunpack.c.h.b16 %v260
    %v838 = vunpack.c.l.b16 %v261
    %v839 = vunpack.c.h.b16 %v261
    %v840 = vunpack.c.l.b16 %v262
    %v841 = vunpack.c.h.b16 %v262
    %v842 = vunpack.c.l.b16 %v263
    %v843 = vunpack.c.h.b16 %v263
    %v844 = vunpack.c.l.b16 %v264
    %v845 = vunpack.c.h.b16 %v264
    %v846 = vunpack.c.l.b16 %v265
    %v847 = vunpack.c.h.b16 %v265
    %v848 = vunpack.c.l.b16 %v266
    %v849 = vunpack.c.h.b16 %v266
    %v850 = vunpack.c.l.b16 %v267
    %v851 = vunpack.c.h.b16 %v267
    %v852 = vunpack.c.l.b16 %v268
    %v853 = vunpack.c.h.b16 %v268
    %v854 = vunpack.c.l.b16 %v269
    %v855 = vunpack.c.h.b16 %v269
    %v856 = vunpack.c.l.b16 %v270
    %v857 = vunpack.c.h.b16 %v270
    %v858 = vunpack.c.l.b16 %v271
    %v859 = vunpack.c.h.b16 %v271
    %v860 = vunpack.c.l.b16 %v272
    %v861 = vunpack.c.h.b16 %v272
    %v862 = vunpack.c.l.b16 %v273
    %v863 = vunpack.c.h.b16 %v273
    %v864 = vunpack.c.l.b16 %v274
    %v865 = vunpack.c.h.b16 %v274
    %v866 = vunpack.c.l.b16 %v275
    %v867 = vunpack.c.h.b16 %v275
    %v868 = vunpack.c.l.b16 %v276
    %v869 = vunpack.c.h.b16 %v276
    %v870 = vunpack.c.l.b16 %v277
    %v871 = vunpack.c.h.b16 %v277
    %v872 = vunpack.c.l.b16 %v278
    %v873 = vunpack.c.h.b16 %v278
    %v874 = vunpack.c.l.b16 %v279
    %v875 = vunpack.c.h.b16 %v279
    %v876 = vunpack.c.l.b16 %v280
    %v877 = vunpack.c.h.b16 %v280
    %v878 = vunpack.c.l.b16 %v281
    %v879 = vunpack.c.h.b16 %v281
    %v880 = vpack.c.b16 %v492, %v488
    %v881 = vpack.c.b16 %v493, %v489
    %v882 = vpack.c.b16 %v494, %v490
    %v883 = vpack.c.b16 %v495, %v491
    %v884 = vpack.c.b16 %v500, %v496
    %v885 = vpack.c.b16 %v501, %v497
    %v886 = vpack.c.b16 %v502, %v498
    %v887 = vpack.c.b16 %v503, %v499
    %v888 = vpack.c.b16 %v508, %v504
    %v889 = vpack.c.b16 %v509, %v505
    %v890 = vpack.c.b16 %v510, %v506
    %v891 = vpack.c.b16 %v511, %v507
    %v892 = vpack.c.b16 %v516, %v512
    %v893 = vpack.c.b16 %v517, %v513
    %v894 = vpack.c.b16 %v518, %v514
    %v895 = vpack.c.b16 %v519, %v515
    %v896 = vpack.c.b16 %v524, %v520
    %v897 = vpack.c.b16 %v525, %v521
    %v898 = vpack.c.b16 %v526, %v522
    %v899 = vpack.c.b16 %v527, %v523
    %v900 = vpack.c.b16 %v532, %v528
    %v901 = vpack.c.b16 %v533, %v529
    %v902 = vpack.c.b16 %v534, %v530
    %v903 = vpack.c.b16 %v535, %v531
    %v904 = vpack.c.b16 %v540, %v536
    %v905 = vpack.c.b16 %v541, %v537
    %v906 = vpack.c.b16 %v542, %v538
    %v907 = vpack.c.b16 %v543, %v539
    %v908 = vpack.c.b16 %v548, %v544
    %v909 = vpack.c.b16 %v549, %v545
    %v910 = vpack.c.b16 %v550, %v546
    %v911 = vpack.c.b16 %v551, %v547
    %v912 = vpack.c.b16 %v556, %v552
    %v913 = vpack.c.b16 %v557, %v553
    %v914 = vpack.c.b16 %v558, %v554
    %v915 = vpack.c.b16 %v559, %v555
    %v916 = vpack.c.b16 %v564, %v560
    %v917 = vpack.c.b16 %v565, %v561
    %v918 = vpack.c.b16 %v566, %v562
    %v919 = vpack.c.b16 %v567, %v563
    %v920 = vpack.c.b16 %v572, %v568
    %v921 = vpack.c.b16 %v573, %v569
    %v922 = vpack.c.b16 %v574, %v570
    %v923 = vpack.c.b16 %v575, %v571
    %v924 = vpack.c.b16 %v580, %v576
    %v925 = vpack.c.b16 %v581, %v577
    %v926 = vpack.c.b16 %v582, %v578
    %v927 = vpack.c.b16 %v583, %v579
    %v928 = vpack.c.b16 %v588, %v584
    %v929 = vpack.c.b16 %v589, %v585
    %v930 = vpack.c.b16 %v590, %v586
    %v931 = vpack.c.b16 %v591, %v587
    %v932 = vpack.c.b16 %v596, %v592
    %v933 = vpack.c.b16 %v597, %v593
    %v934 = vpack.c.b16 %v598, %v594
    %v935 = vpack.c.b16 %v599, %v595
    %v936 = vpack.c.b16 %v604, %v600
    %v937 = vpack.c.b16 %v605, %v601
    %v938 = vpack.c.b16 %v606, %v602
    %v939 = vpack.c.b16 %v607, %v603
    %v940 = vpack.c.b16 %v612, %v608
    %v941 = vpack.c.b16 %v613, %v609
    %v942 = vpack.c.b16 %v614, %v610
    %v943 = vpack.c.b16 %v615, %v611
    %v944 = vpack.c.b16 %v620, %v616
    %v945 = vpack.c.b16 %v621, %v617
    %v946 = vpack.c.b16 %v622, %v618
    %v947 = vpack.c.b16 %v623, %v619
    %v948 = vpack.c.b16 %v628, %v624
    %v949 = vpack.c.b16 %v629, %v625
    %v950 = vpack.c.b16 %v630, %v626
    %v951 = vpack.c.b16 %v631, %v627
    %v952 = vpack.c.b16 %v636, %v632
    %v953 = vpack.c.b16 %v637, %v633
    %v954 = vpack.c.b16 %v638, %v634
    %v955 = vpack.c.b16 %v639, %v635
    %v956 = vpack.c.b16 %v644, %v640
    %v957 = vpack.c.b16 %v645, %v641
    %v958 = vpack.c.b16 %v646, %v642
    %v959 = vpack.c.b16 %v647, %v643
    %v960 = vpack.c.b16 %v652, %v648
    %v961 = vpack.c.b16 %v653, %v649
    %v962 = vpack.c.b16 %v654, %v650
    %v963 = vpack.c.b16 %v655, %v651
    %v964 = vpack.c.b16 %v660, %v656
    %v965 = vpack.c.b16 %v661, %v657
    %v966 = vpack.c.b16 %v662, %v658
    %v967 = vpack.c.b16 %v663, %v659
    %v968 = vpack.c.b16 %v668, %v664
    %v969 = vpack.c.b16 %v669, %v665
    %v970 = vpack.c.b16 %v670, %v666
    %v971 = vpack.c.b16 %v671, %v667
    %v972 = vpack.c.b16 %v676, %v672
    %v973 = vpack.c.b16 %v677, %v673
    %v974 = vpack.c.b16 %v678, %v674
    %v975 = vpack.c.b16 %v679, %v675
    %v976 = vpack.c.b16 %v684, %v680
    %v977 = vpack.c.b16 %v685, %v681
    %v978 = vpack.c.b16 %v686, %v682
    %v979 = vpack.c.b16 %v687, %v683
    %v980 = vpack.c.b16 %v692, %v688
    %v981 = vpack.c.b16 %v693, %v689
    %v982 = vpack.c.b16 %v694, %v690
    %v983 = vpack.c.b16 %v695, %v691
    %v984 = vpack.c.b16 %v700, %v696
    %v985 = vpack.c.b16 %v701, %v697
    %v986 = vpack.c.b16 %v702, %v698
    %v987 = vpack.c.b16 %v703, %v699
    %v988 = vpack.c.b16 %v708, %v704
    %v989 = vpack.c.b16 %v709, %v705
    %v990 = vpack.c.b16 %v710, %v706
    %v991 = vpack.c.b16 %v711, %v707
    %v992 = vpack.c.b16 %v716, %v712
    %v993 = vpack.c.b16 %v717, %v713
    %v994 = vpack.c.b16 %v718, %v714
    %v995 = vpack.c.b16 %v719, %v715
    %v996 = vpack.c.b16 %v724, %v720
    %v997 = vpack.c.b16 %v725, %v721
    %v998 = vpack.c.b16 %v726, %v722
    %v999 = vpack.c.b16 %v727, %v723
    %v1000 = vpack.c.b16 %v732, %v728
    %v1001 = vpack.c.b16 %v733, %v729
    %v1002 = vpack.c.b16 %v734, %v730
    %v1003 = vpack.c.b16 %v735, %v731
    %v1004 = vpack.c.b16 %v740, %v736
    %v1005 = vpack.c.b16 %v741, %v737
    %v1006 = vpack.c.b16 %v742, %v738
    %v1007 = vpack.c.b16 %v743, %v739
    %v1008 = vpack.c.b16 %v748, %v744
    %v1009 = vpack.c.b16 %v749, %v745
    %v1010 = vpack.c.b16 %v750, %v746
    %v1011 = vpack.c.b16 %v751, %v747
    %v1012 = vpack.c.b16 %v756, %v752
    %v1013 = vpack.c.b16 %v757, %v753
    %v1014 = vpack.c.b16 %v758, %v754
    %v1015 = vpack.c.b16 %v759, %v755
    %v1016 = vpack.c.b16 %v764, %v760
    %v1017 = vpack.c.b16 %v765, %v761
    %v1018 = vpack.c.b16 %v766, %v762
    %v1019 = vpack.c.b16 %v767, %v763
    %v1020 = vpack.c.b16 %v772, %v768
    %v1021 = vpack.c.b16 %v773, %v769
    %v1022 = vpack.c.b16 %v774, %v770
    %v1023 = vpack.c.b16 %v775, %v771
    %v1024 = vpack.c.b16 %v780, %v776
    %v1025 = vpack.c.b16 %v781, %v777
    %v1026 = vpack.c.b16 %v782, %v778
    %v1027 = vpack.c.b16 %v783, %v779
    %v1028 = vpack.c.b16 %v788, %v784
    %v1029 = vpack.c.b16 %v789, %v785
    %v1030 = vpack.c.b16 %v790, %v786
    %v1031 = vpack.c.b16 %v791, %v787
    %v1032 = vpack.c.b16 %v796, %v792
    %v1033 = vpack.c.b16 %v797, %v793
    %v1034 = vpack.c.b16 %v798, %v794
    %v1035 = vpack.c.b16 %v799, %v795
    %v1036 = vpack.c.b16 %v804, %v800
    %v1037 = vpack.c.b16 %v805, %v801
    %v1038 = vpack.c.b16 %v806, %v802
    %v1039 = vpack.c.b16 %v807, %v803
    %v1040 = vpack.c.b16 %v812, %v808
    %v1041 = vpack.c.b16 %v813, %v809
    %v1042 = vpack.c.b16 %v814, %v810
    %v1043 = vpack.c.b16 %v815, %v811
    %v1044 = vpack.c.b16 %v820, %v816
    %v1045 = vpack.c.b16 %v821, %v817
    %v1046 = vpack.c.b16 %v822, %v818
    %v1047 = vpack.c.b16 %v823, %v819
    %v1048 = vpack.c.b16 %v828, %v824
    %v1049 = vpack.c.b16 %v829, %v825
    %v1050 = vpack.c.b16 %v830, %v826
    %v1051 = vpack.c.b16 %v831, %v827
    %v1052 = vpack.c.b16 %v836, %v832
    %v1053 = vpack.c.b16 %v837, %v833
    %v1054 = vpack.c.b16 %v838, %v834
    %v1055 = vpack.c.b16 %v839, %v835
    %v1056 = vpack.c.b16 %v844, %v840
    %v1057 = vpack.c.b16 %v845, %v841
    %v1058 = vpack.c.b16 %v846, %v842
    %v1059 = vpack.c.b16 %v847, %v843
    %v1060 = vpack.c.b16 %v852, %v848
    %v1061 = vpack.c.b16 %v853, %v849
    %v1062 = vpack.c.b16 %v854, %v850
    %v1063 = vpack.c.b16 %v855, %v851
    %v1064 = vpack.c.b16 %v860, %v856
    %v1065 = vpack.c.b16 %v861, %v857
    %v1066 = vpack.c.b16 %v862, %v858
    %v1067 = vpack.c.b16 %v863, %v859
    %v1068 = vpack.c.b16 %v868, %v864
    %v1069 = vpack.c.b16 %v869, %v865
    %v1070 = vpack.c.b16 %v870, %v866
    %v1071 = vpack.c.b16 %v871, %v867
    %v1072 = vpack.c.b16 %v876, %v872
    %v1073 = vpack.c.b16 %v877, %v873
    %v1074 = vpack.c.b16 %v878, %v874
    %v1075 = vpack.c.b16 %v879, %v875
    %vm1272 = vcmask 130048
    %v1274 = vsel %vm1272, %v85, 0
    %1276 = vmatpush.bf16.msra.mxu0 %v908
    %1277 = vmatpush.bf16.msra.mxu0 %v904
    %1278 = vmatpush.bf16.msra.mxu0 %v900
    %1279 = vmatpush.bf16.msra.mxu0 %v896
    %1280 = vmatpush.bf16.msra.mxu0 %v892
    %1281 = vmatpush.bf16.msra.mxu0 %v888
    %1282 = vmatpush.bf16.msra.mxu0 %v884
    %1283 = vmatpush.bf16.msra.mxu0 %v880
    %1284 = vmatmul.bf16.gmra.mxu0 %v79
    %v1285 = vpop.f32.mrf.mxu0
    %v1286 = vadd.f32 %v284, %v1285
    %v1287 = vpop.f32.mrf.mxu0
    %v1288 = vadd.f32 %v284, %v1287
    %1289 = vdwg.mxu0
    %1290 = vmatpush.bf16.msra.mxu0 %v940
    %1291 = vmatpush.bf16.msra.mxu0 %v936
    %1292 = vmatpush.bf16.msra.mxu0 %v932
    %1293 = vmatpush.bf16.msra.mxu0 %v928
    %1294 = vmatpush.bf16.msra.mxu0 %v924
    %1295 = vmatpush.bf16.msra.mxu0 %v920
    %1296 = vmatpush.bf16.msra.mxu0 %v916
    %1297 = vmatpush.bf16.msra.mxu0 %v912
    %1298 = vmatmul.bf16.gmra.mxu0 %v80
    %v1299 = vpop.f32.mrf.mxu0
    %v1300 = vadd.f32 %v1286, %v1299
    %v1301 = vpop.f32.mrf.mxu0
    %v1302 = vadd.f32 %v1288, %v1301
    %1303 = vdwg.mxu0
    %1304 = vmatpush.bf16.msra.mxu0 %v972
    %1305 = vmatpush.bf16.msra.mxu0 %v968
    %1306 = vmatpush.bf16.msra.mxu0 %v964
    %1307 = vmatpush.bf16.msra.mxu0 %v960
    %1308 = vmatpush.bf16.msra.mxu0 %v956
    %1309 = vmatpush.bf16.msra.mxu0 %v952
    %1310 = vmatpush.bf16.msra.mxu0 %v948
    %1311 = vmatpush.bf16.msra.mxu0 %v944
    %1312 = vmatmul.bf16.gmra.mxu0 %v81
    %v1313 = vpop.f32.mrf.mxu0
    %v1314 = vadd.f32 %v1300, %v1313
    %v1315 = vpop.f32.mrf.mxu0
    %v1316 = vadd.f32 %v1302, %v1315
    %1317 = vdwg.mxu0
    %1318 = vmatpush.bf16.msra.mxu0 %v1004
    %1319 = vmatpush.bf16.msra.mxu0 %v1000
    %1320 = vmatpush.bf16.msra.mxu0 %v996
    %1321 = vmatpush.bf16.msra.mxu0 %v992
    %1322 = vmatpush.bf16.msra.mxu0 %v988
    %1323 = vmatpush.bf16.msra.mxu0 %v984
    %1324 = vmatpush.bf16.msra.mxu0 %v980
    %1325 = vmatpush.bf16.msra.mxu0 %v976
    %1326 = vmatmul.bf16.gmra.mxu0 %v82
    %v1327 = vpop.f32.mrf.mxu0
    %v1328 = vadd.f32 %v1314, %v1327
    %v1329 = vpop.f32.mrf.mxu0
    %v1330 = vadd.f32 %v1316, %v1329
    %1331 = vdwg.mxu0
    %1332 = vmatpush.bf16.msra.mxu0 %v1036
    %1333 = vmatpush.bf16.msra.mxu0 %v1032
    %1334 = vmatpush.bf16.msra.mxu0 %v1028
    %1335 = vmatpush.bf16.msra.mxu0 %v1024
    %1336 = vmatpush.bf16.msra.mxu0 %v1020
    %1337 = vmatpush.bf16.msra.mxu0 %v1016
    %1338 = vmatpush.bf16.msra.mxu0 %v1012
    %1339 = vmatpush.bf16.msra.mxu0 %v1008
    %1340 = vmatmul.bf16.gmra.mxu0 %v83
    %v1341 = vpop.f32.mrf.mxu0
    %v1342 = vadd.f32 %v1328, %v1341
    %v1343 = vpop.f32.mrf.mxu0
    %v1344 = vadd.f32 %v1330, %v1343
    %1345 = vdwg.mxu0
    %1346 = vmatpush.bf16.msra.mxu0 %v1068
    %1347 = vmatpush.bf16.msra.mxu0 %v1064
    %1348 = vmatpush.bf16.msra.mxu0 %v1060
    %1349 = vmatpush.bf16.msra.mxu0 %v1056
    %1350 = vmatpush.bf16.msra.mxu0 %v1052
    %1351 = vmatpush.bf16.msra.mxu0 %v1048
    %1352 = vmatpush.bf16.msra.mxu0 %v1044
    %1353 = vmatpush.bf16.msra.mxu0 %v1040
    %1354 = vmatmul.bf16.gmra.mxu0 %v84
    %v1355 = vpop.f32.mrf.mxu0
    %v1356 = vadd.f32 %v1342, %v1355
    %v1357 = vpop.f32.mrf.mxu0
    %v1358 = vadd.f32 %v1344, %v1357
    %1359 = vdwg.mxu0
    %1360 = vmatpush.bf16.msra.mxu0 0
    %1361 = vmatpush.bf16.msra.mxu0 0
    %1362 = vmatpush.bf16.msra.mxu0 0
    %1363 = vmatpush.bf16.msra.mxu0 0
    %1364 = vmatpush.bf16.msra.mxu0 0
    %1365 = vmatpush.bf16.msra.mxu0 0
    %1366 = vmatpush.bf16.msra.mxu0 0
    %1367 = vmatpush.bf16.msra.mxu0 %v1072
    %1368 = vmatmul.bf16.gmra.mxu0 %v1274
    %v1369 = vpop.f32.mrf.mxu0
    %v1370 = vadd.f32 %v1356, %v1369
    %v1371 = vpop.f32.mrf.mxu0
    %v1372 = vadd.f32 %v1358, %v1371
    %1373 = vdwg.mxu0
    %1374 = vmatpush.bf16.msra.mxu0 %v909
    %1375 = vmatpush.bf16.msra.mxu0 %v905
    %1376 = vmatpush.bf16.msra.mxu0 %v901
    %1377 = vmatpush.bf16.msra.mxu0 %v897
    %1378 = vmatpush.bf16.msra.mxu0 %v893
    %1379 = vmatpush.bf16.msra.mxu0 %v889
    %1380 = vmatpush.bf16.msra.mxu0 %v885
    %1381 = vmatpush.bf16.msra.mxu0 %v881
    %1382 = vmatmul.bf16.gmra.mxu0 %v79
    %v1383 = vpop.f32.mrf.mxu0
    %v1384 = vadd.f32 %v285, %v1383
    %v1385 = vpop.f32.mrf.mxu0
    %v1386 = vadd.f32 %v285, %v1385
    %1387 = vdwg.mxu0
    %1388 = vmatpush.bf16.msra.mxu0 %v941
    %1389 = vmatpush.bf16.msra.mxu0 %v937
    %1390 = vmatpush.bf16.msra.mxu0 %v933
    %1391 = vmatpush.bf16.msra.mxu0 %v929
    %1392 = vmatpush.bf16.msra.mxu0 %v925
    %1393 = vmatpush.bf16.msra.mxu0 %v921
    %1394 = vmatpush.bf16.msra.mxu0 %v917
    %1395 = vmatpush.bf16.msra.mxu0 %v913
    %1396 = vmatmul.bf16.gmra.mxu0 %v80
    %v1397 = vpop.f32.mrf.mxu0
    %v1398 = vadd.f32 %v1384, %v1397
    %v1399 = vpop.f32.mrf.mxu0
    %v1400 = vadd.f32 %v1386, %v1399
    %1401 = vdwg.mxu0
    %1402 = vmatpush.bf16.msra.mxu0 %v973
    %1403 = vmatpush.bf16.msra.mxu0 %v969
    %1404 = vmatpush.bf16.msra.mxu0 %v965
    %1405 = vmatpush.bf16.msra.mxu0 %v961
    %1406 = vmatpush.bf16.msra.mxu0 %v957
    %1407 = vmatpush.bf16.msra.mxu0 %v953
    %1408 = vmatpush.bf16.msra.mxu0 %v949
    %1409 = vmatpush.bf16.msra.mxu0 %v945
    %1410 = vmatmul.bf16.gmra.mxu0 %v81
    %v1411 = vpop.f32.mrf.mxu0
    %v1412 = vadd.f32 %v1398, %v1411
    %v1413 = vpop.f32.mrf.mxu0
    %v1414 = vadd.f32 %v1400, %v1413
    %1415 = vdwg.mxu0
    %1416 = vmatpush.bf16.msra.mxu0 %v1005
    %1417 = vmatpush.bf16.msra.mxu0 %v1001
    %1418 = vmatpush.bf16.msra.mxu0 %v997
    %1419 = vmatpush.bf16.msra.mxu0 %v993
    %1420 = vmatpush.bf16.msra.mxu0 %v989
    %1421 = vmatpush.bf16.msra.mxu0 %v985
    %1422 = vmatpush.bf16.msra.mxu0 %v981
    %1423 = vmatpush.bf16.msra.mxu0 %v977
    %1424 = vmatmul.bf16.gmra.mxu0 %v82
    %v1425 = vpop.f32.mrf.mxu0
    %v1426 = vadd.f32 %v1412, %v1425
    %v1427 = vpop.f32.mrf.mxu0
    %v1428 = vadd.f32 %v1414, %v1427
    %1429 = vdwg.mxu0
    %1430 = vmatpush.bf16.msra.mxu0 %v1037
    %1431 = vmatpush.bf16.msra.mxu0 %v1033
    %1432 = vmatpush.bf16.msra.mxu0 %v1029
    %1433 = vmatpush.bf16.msra.mxu0 %v1025
    %1434 = vmatpush.bf16.msra.mxu0 %v1021
    %1435 = vmatpush.bf16.msra.mxu0 %v1017
    %1436 = vmatpush.bf16.msra.mxu0 %v1013
    %1437 = vmatpush.bf16.msra.mxu0 %v1009
    %1438 = vmatmul.bf16.gmra.mxu0 %v83
    %v1439 = vpop.f32.mrf.mxu0
    %v1440 = vadd.f32 %v1426, %v1439
    %v1441 = vpop.f32.mrf.mxu0
    %v1442 = vadd.f32 %v1428, %v1441
    %1443 = vdwg.mxu0
    %1444 = vmatpush.bf16.msra.mxu0 %v1069
    %1445 = vmatpush.bf16.msra.mxu0 %v1065
    %1446 = vmatpush.bf16.msra.mxu0 %v1061
    %1447 = vmatpush.bf16.msra.mxu0 %v1057
    %1448 = vmatpush.bf16.msra.mxu0 %v1053
    %1449 = vmatpush.bf16.msra.mxu0 %v1049
    %1450 = vmatpush.bf16.msra.mxu0 %v1045
    %1451 = vmatpush.bf16.msra.mxu0 %v1041
    %1452 = vmatmul.bf16.gmra.mxu0 %v84
    %v1453 = vpop.f32.mrf.mxu0
    %v1454 = vadd.f32 %v1440, %v1453
    %v1455 = vpop.f32.mrf.mxu0
    %v1456 = vadd.f32 %v1442, %v1455
    %1457 = vdwg.mxu0
    %1458 = vmatpush.bf16.msra.mxu0 0
    %1459 = vmatpush.bf16.msra.mxu0 0
    %1460 = vmatpush.bf16.msra.mxu0 0
    %1461 = vmatpush.bf16.msra.mxu0 0
    %1462 = vmatpush.bf16.msra.mxu0 0
    %1463 = vmatpush.bf16.msra.mxu0 0
    %1464 = vmatpush.bf16.msra.mxu0 0
    %1465 = vmatpush.bf16.msra.mxu0 %v1073
    %1466 = vmatmul.bf16.gmra.mxu0 %v1274
    %v1467 = vpop.f32.mrf.mxu0
    %v1468 = vadd.f32 %v1454, %v1467
    %v1469 = vpop.f32.mrf.mxu0
    %v1470 = vadd.f32 %v1456, %v1469
    %1471 = vdwg.mxu0
    %1472 = vmatpush.bf16.msra.mxu0 %v910
    %1473 = vmatpush.bf16.msra.mxu0 %v906
    %1474 = vmatpush.bf16.msra.mxu0 %v902
    %1475 = vmatpush.bf16.msra.mxu0 %v898
    %1476 = vmatpush.bf16.msra.mxu0 %v894
    %1477 = vmatpush.bf16.msra.mxu0 %v890
    %1478 = vmatpush.bf16.msra.mxu0 %v886
    %1479 = vmatpush.bf16.msra.mxu0 %v882
    %1480 = vmatmul.bf16.gmra.mxu0 %v79
    %v1481 = vpop.f32.mrf.mxu0
    %v1482 = vadd.f32 %v286, %v1481
    %v1483 = vpop.f32.mrf.mxu0
    %v1484 = vadd.f32 %v286, %v1483
    %1485 = vdwg.mxu0
    %1486 = vmatpush.bf16.msra.mxu0 %v942
    %1487 = vmatpush.bf16.msra.mxu0 %v938
    %1488 = vmatpush.bf16.msra.mxu0 %v934
    %1489 = vmatpush.bf16.msra.mxu0 %v930
    %1490 = vmatpush.bf16.msra.mxu0 %v926
    %1491 = vmatpush.bf16.msra.mxu0 %v922
    %1492 = vmatpush.bf16.msra.mxu0 %v918
    %1493 = vmatpush.bf16.msra.mxu0 %v914
    %1494 = vmatmul.bf16.gmra.mxu0 %v80
    %v1495 = vpop.f32.mrf.mxu0
    %v1496 = vadd.f32 %v1482, %v1495
    %v1497 = vpop.f32.mrf.mxu0
    %v1498 = vadd.f32 %v1484, %v1497
    %1499 = vdwg.mxu0
    %1500 = vmatpush.bf16.msra.mxu0 %v974
    %1501 = vmatpush.bf16.msra.mxu0 %v970
    %1502 = vmatpush.bf16.msra.mxu0 %v966
    %1503 = vmatpush.bf16.msra.mxu0 %v962
    %1504 = vmatpush.bf16.msra.mxu0 %v958
    %1505 = vmatpush.bf16.msra.mxu0 %v954
    %1506 = vmatpush.bf16.msra.mxu0 %v950
    %1507 = vmatpush.bf16.msra.mxu0 %v946
    %1508 = vmatmul.bf16.gmra.mxu0 %v81
    %v1509 = vpop.f32.mrf.mxu0
    %v1510 = vadd.f32 %v1496, %v1509
    %v1511 = vpop.f32.mrf.mxu0
    %v1512 = vadd.f32 %v1498, %v1511
    %1513 = vdwg.mxu0
    %1514 = vmatpush.bf16.msra.mxu0 %v1006
    %1515 = vmatpush.bf16.msra.mxu0 %v1002
    %1516 = vmatpush.bf16.msra.mxu0 %v998
    %1517 = vmatpush.bf16.msra.mxu0 %v994
    %1518 = vmatpush.bf16.msra.mxu0 %v990
    %1519 = vmatpush.bf16.msra.mxu0 %v986
    %1520 = vmatpush.bf16.msra.mxu0 %v982
    %1521 = vmatpush.bf16.msra.mxu0 %v978
    %1522 = vmatmul.bf16.gmra.mxu0 %v82
    %v1523 = vpop.f32.mrf.mxu0
    %v1524 = vadd.f32 %v1510, %v1523
    %v1525 = vpop.f32.mrf.mxu0
    %v1526 = vadd.f32 %v1512, %v1525
    %1527 = vdwg.mxu0
    %1528 = vmatpush.bf16.msra.mxu0 %v1038
    %1529 = vmatpush.bf16.msra.mxu0 %v1034
    %1530 = vmatpush.bf16.msra.mxu0 %v1030
    %1531 = vmatpush.bf16.msra.mxu0 %v1026
    %1532 = vmatpush.bf16.msra.mxu0 %v1022
    %1533 = vmatpush.bf16.msra.mxu0 %v1018
    %1534 = vmatpush.bf16.msra.mxu0 %v1014
    %1535 = vmatpush.bf16.msra.mxu0 %v1010
    %1536 = vmatmul.bf16.gmra.mxu0 %v83
    %v1537 = vpop.f32.mrf.mxu0
    %v1538 = vadd.f32 %v1524, %v1537
    %v1539 = vpop.f32.mrf.mxu0
    %v1540 = vadd.f32 %v1526, %v1539
    %1541 = vdwg.mxu0
    %1542 = vmatpush.bf16.msra.mxu0 %v1070
    %1543 = vmatpush.bf16.msra.mxu0 %v1066
    %1544 = vmatpush.bf16.msra.mxu0 %v1062
    %1545 = vmatpush.bf16.msra.mxu0 %v1058
    %1546 = vmatpush.bf16.msra.mxu0 %v1054
    %1547 = vmatpush.bf16.msra.mxu0 %v1050
    %1548 = vmatpush.bf16.msra.mxu0 %v1046
    %1549 = vmatpush.bf16.msra.mxu0 %v1042
    %1550 = vmatmul.bf16.gmra.mxu0 %v84
    %v1551 = vpop.f32.mrf.mxu0
    %v1552 = vadd.f32 %v1538, %v1551
    %v1553 = vpop.f32.mrf.mxu0
    %v1554 = vadd.f32 %v1540, %v1553
    %1555 = vdwg.mxu0
    %1556 = vmatpush.bf16.msra.mxu0 0
    %1557 = vmatpush.bf16.msra.mxu0 0
    %1558 = vmatpush.bf16.msra.mxu0 0
    %1559 = vmatpush.bf16.msra.mxu0 0
    %1560 = vmatpush.bf16.msra.mxu0 0
    %1561 = vmatpush.bf16.msra.mxu0 0
    %1562 = vmatpush.bf16.msra.mxu0 0
    %1563 = vmatpush.bf16.msra.mxu0 %v1074
    %1564 = vmatmul.bf16.gmra.mxu0 %v1274
    %v1565 = vpop.f32.mrf.mxu0
    %v1566 = vadd.f32 %v1552, %v1565
    %v1567 = vpop.f32.mrf.mxu0
    %v1568 = vadd.f32 %v1554, %v1567
    %1569 = vdwg.mxu0
    %1570 = vmatpush.bf16.msra.mxu0 %v911
    %1571 = vmatpush.bf16.msra.mxu0 %v907
    %1572 = vmatpush.bf16.msra.mxu0 %v903
    %1573 = vmatpush.bf16.msra.mxu0 %v899
    %1574 = vmatpush.bf16.msra.mxu0 %v895
    %1575 = vmatpush.bf16.msra.mxu0 %v891
    %1576 = vmatpush.bf16.msra.mxu0 %v887
    %1577 = vmatpush.bf16.msra.mxu0 %v883
    %1578 = vmatmul.bf16.gmra.mxu0 %v79
    %v1579 = vpop.f32.mrf.mxu0
    %v1580 = vadd.f32 %v287, %v1579
    %v1581 = vpop.f32.mrf.mxu0
    %v1582 = vadd.f32 %v287, %v1581
    %1583 = vdwg.mxu0
    %1584 = vmatpush.bf16.msra.mxu0 %v943
    %1585 = vmatpush.bf16.msra.mxu0 %v939
    %1586 = vmatpush.bf16.msra.mxu0 %v935
    %1587 = vmatpush.bf16.msra.mxu0 %v931
    %1588 = vmatpush.bf16.msra.mxu0 %v927
    %1589 = vmatpush.bf16.msra.mxu0 %v923
    %1590 = vmatpush.bf16.msra.mxu0 %v919
    %1591 = vmatpush.bf16.msra.mxu0 %v915
    %1592 = vmatmul.bf16.gmra.mxu0 %v80
    %v1593 = vpop.f32.mrf.mxu0
    %v1594 = vadd.f32 %v1580, %v1593
    %v1595 = vpop.f32.mrf.mxu0
    %v1596 = vadd.f32 %v1582, %v1595
    %1597 = vdwg.mxu0
    %1598 = vmatpush.bf16.msra.mxu0 %v975
    %1599 = vmatpush.bf16.msra.mxu0 %v971
    %1600 = vmatpush.bf16.msra.mxu0 %v967
    %1601 = vmatpush.bf16.msra.mxu0 %v963
    %1602 = vmatpush.bf16.msra.mxu0 %v959
    %1603 = vmatpush.bf16.msra.mxu0 %v955
    %1604 = vmatpush.bf16.msra.mxu0 %v951
    %1605 = vmatpush.bf16.msra.mxu0 %v947
    %1606 = vmatmul.bf16.gmra.mxu0 %v81
    %v1607 = vpop.f32.mrf.mxu0
    %v1608 = vadd.f32 %v1594, %v1607
    %v1609 = vpop.f32.mrf.mxu0
    %v1610 = vadd.f32 %v1596, %v1609
    %1611 = vdwg.mxu0
    %1612 = vmatpush.bf16.msra.mxu0 %v1007
    %1613 = vmatpush.bf16.msra.mxu0 %v1003
    %1614 = vmatpush.bf16.msra.mxu0 %v999
    %1615 = vmatpush.bf16.msra.mxu0 %v995
    %1616 = vmatpush.bf16.msra.mxu0 %v991
    %1617 = vmatpush.bf16.msra.mxu0 %v987
    %1618 = vmatpush.bf16.msra.mxu0 %v983
    %1619 = vmatpush.bf16.msra.mxu0 %v979
    %1620 = vmatmul.bf16.gmra.mxu0 %v82
    %v1621 = vpop.f32.mrf.mxu0
    %v1622 = vadd.f32 %v1608, %v1621
    %v1623 = vpop.f32.mrf.mxu0
    %v1624 = vadd.f32 %v1610, %v1623
    %1625 = vdwg.mxu0
    %1626 = vmatpush.bf16.msra.mxu0 %v1039
    %1627 = vmatpush.bf16.msra.mxu0 %v1035
    %1628 = vmatpush.bf16.msra.mxu0 %v1031
    %1629 = vmatpush.bf16.msra.mxu0 %v1027
    %1630 = vmatpush.bf16.msra.mxu0 %v1023
    %1631 = vmatpush.bf16.msra.mxu0 %v1019
    %1632 = vmatpush.bf16.msra.mxu0 %v1015
    %1633 = vmatpush.bf16.msra.mxu0 %v1011
    %1634 = vmatmul.bf16.gmra.mxu0 %v83
    %v1635 = vpop.f32.mrf.mxu0
    %v1636 = vadd.f32 %v1622, %v1635
    %v1637 = vpop.f32.mrf.mxu0
    %v1638 = vadd.f32 %v1624, %v1637
    %1639 = vdwg.mxu0
    %1640 = vmatpush.bf16.msra.mxu0 %v1071
    %1641 = vmatpush.bf16.msra.mxu0 %v1067
    %1642 = vmatpush.bf16.msra.mxu0 %v1063
    %1643 = vmatpush.bf16.msra.mxu0 %v1059
    %1644 = vmatpush.bf16.msra.mxu0 %v1055
    %1645 = vmatpush.bf16.msra.mxu0 %v1051
    %1646 = vmatpush.bf16.msra.mxu0 %v1047
    %1647 = vmatpush.bf16.msra.mxu0 %v1043
    %1648 = vmatmul.bf16.gmra.mxu0 %v84
    %v1649 = vpop.f32.mrf.mxu0
    %v1650 = vadd.f32 %v1636, %v1649
    %v1651 = vpop.f32.mrf.mxu0
    %v1652 = vadd.f32 %v1638, %v1651
    %1653 = vdwg.mxu0
    %1654 = vmatpush.bf16.msra.mxu0 0
    %1655 = vmatpush.bf16.msra.mxu0 0
    %1656 = vmatpush.bf16.msra.mxu0 0
    %1657 = vmatpush.bf16.msra.mxu0 0
    %1658 = vmatpush.bf16.msra.mxu0 0
    %1659 = vmatpush.bf16.msra.mxu0 0
    %1660 = vmatpush.bf16.msra.mxu0 0
    %1661 = vmatpush.bf16.msra.mxu0 %v1075
    %1662 = vmatmul.bf16.gmra.mxu0 %v1274
    %v1663 = vpop.f32.mrf.mxu0
    %v1664 = vadd.f32 %v1650, %v1663
    %v1665 = vpop.f32.mrf.mxu0
    %v1666 = vadd.f32 %v1652, %v1665
    %1667 = vdwg.mxu0
    %v1668 = vmax.f32 %v1370, 0.0
    %v1669 = vmax.f32 %v1468, 0.0
    %v1670 = vmax.f32 %v1566, 0.0
    %v1671 = vmax.f32 %v1664, 0.0
    %v1672 = vmax.f32 %v1372, 0.0
    %v1673 = vmax.f32 %v1470, 0.0
    %v1674 = vmax.f32 %v1568, 0.0
    %v1675 = vmax.f32 %v1666, 0.0
    %v1676 = vpack.c.bf16 %v1672, %v1668
    %v1677 = vpack.c.bf16 %v1673, %v1669
    %v1678 = vpack.c.bf16 %v1674, %v1670
    %v1679 = vpack.c.bf16 %v1675, %v1671
    %v1680 = vld [vmem:[%s3] sm:$0xf]
    %v1681 = vld [vmem:[%s3 + $0x4] sm:$0xf]
    %v1682 = vld [vmem:[%s3 + $0x8] sm:$0xf]
    %v1683 = vld [vmem:[%s3 + $0xc] sm:$0xf]
    %v1684 = vld [vmem:[%s3 + $0x10] sm:$0xf]
    %v1685 = vld [vmem:[%s3 + $0x14] sm:$0xf]
    %v1686 = vld [vmem:[%s3 + $0x18] sm:$0xf]
    %v1687 = vld [vmem:[%s3 + $0x1c] sm:$0xf]
    %v1688 = vld [vmem:[%s3 + $0x20] sm:$0xf]
    %v1689 = vld [vmem:[%s3 + $0x24] sm:$0xf]
    %v1690 = vld [vmem:[%s3 + $0x28] sm:$0xf]
    %v1691 = vld [vmem:[%s3 + $0x2c] sm:$0xf]
    %v1692 = vld [vmem:[%s3 + $0x30] sm:$0xf]
    %v1693 = vld [vmem:[%s3 + $0x34] sm:$0xf]
    %v1694 = vld [vmem:[%s3 + $0x38] sm:$0xf]
    %v1695 = vld [vmem:[%s3 + $0x3c] sm:$0xf]
    %v1696 = vld [vmem:[%s3 + $0x40] sm:$0xf]
    %v1697 = vld [vmem:[%s3 + $0x44] sm:$0xf]
    %v1698 = vld [vmem:[%s3 + $0x48] sm:$0xf]
    %v1699 = vld [vmem:[%s3 + $0x4c] sm:$0xf]
    %v1700 = vld [vmem:[%s3 + $0x50] sm:$0xf]
    %v1701 = vld [vmem:[%s3 + $0x54] sm:$0xf]
    %v1702 = vld [vmem:[%s3 + $0x58] sm:$0xf]
    %v1703 = vld [vmem:[%s3 + $0x5c] sm:$0xf]
    %v1704 = vld [vmem:[%s3 + $0x60] sm:$0xf]
    %v1705 = vld [vmem:[%s3 + $0x64] sm:$0xf]
    %v1706 = vld [vmem:[%s3 + $0x68] sm:$0xf]
    %v1707 = vld [vmem:[%s3 + $0x6c] sm:$0xf]
    %v1708 = vld [vmem:[%s3 + $0x70] sm:$0xf]
    %v1709 = vld [vmem:[%s3 + $0x74] sm:$0xf]
    %v1710 = vld [vmem:[%s3 + $0x78] sm:$0xf]
    %v1711 = vld [vmem:[%s3 + $0x7c] sm:$0xf]
    %v1712 = vld [vmem:[%s3 + $0x80] sm:$0xf]
    %v1713 = vld [vmem:[%s3 + $0x84] sm:$0xf]
    %v1714 = vld [vmem:[%s3 + $0x88] sm:$0xf]
    %v1715 = vld [vmem:[%s3 + $0x8c] sm:$0xf]
    %v1716 = vld [vmem:[%s3 + $0x90] sm:$0xf]
    %v1717 = vld [vmem:[%s3 + $0x94] sm:$0xf]
    %v1718 = vld [vmem:[%s3 + $0x98] sm:$0xf]
    %v1719 = vld [vmem:[%s3 + $0x9c] sm:$0xf]
    %v1720 = vld [vmem:[%s3 + $0xa0] sm:$0xf]
    %v1721 = vld [vmem:[%s3 + $0xa4] sm:$0xf]
    %v1722 = vld [vmem:[%s3 + $0xa8] sm:$0xf]
    %v1723 = vld [vmem:[%s3 + $0xac] sm:$0xf]
    %v1724 = vld [vmem:[%s3 + $0xb0] sm:$0xf]
    %v1725 = vld [vmem:[%s3 + $0xb4] sm:$0xf]
    %v1726 = vld [vmem:[%s3 + $0xb8] sm:$0xf]
    %v1727 = vld [vmem:[%s3 + $0xbc] sm:$0xf]
    %v1728 = vld [vmem:[%s3 + $0xc0] sm:$0xf]
    %v1729 = vld [vmem:[%s3 + $0xc4] sm:$0xf]
    %v1730 = vld [vmem:[%s3 + $0xc8] sm:$0xf]
    %v1731 = vld [vmem:[%s3 + $0xcc] sm:$0xf]
    %v1732 = vld [vmem:[%s3 + $0xd0] sm:$0xf]
    %v1733 = vld [vmem:[%s3 + $0xd4] sm:$0xf]
    %v1734 = vld [vmem:[%s3 + $0xd8] sm:$0xf]
    %v1735 = vld [vmem:[%s3 + $0xdc] sm:$0xf]
    %v1736 = vld [vmem:[%s3 + $0xe0] sm:$0xf]
    %v1737 = vld [vmem:[%s3 + $0xe4] sm:$0xf]
    %v1738 = vld [vmem:[%s3 + $0xe8] sm:$0xf]
    %v1739 = vld [vmem:[%s3 + $0xec] sm:$0xf]
    %v1740 = vld [vmem:[%s3 + $0xf0] sm:$0xf]
    %v1741 = vld [vmem:[%s3 + $0xf4] sm:$0xf]
    %v1742 = vld [vmem:[%s3 + $0xf8] sm:$0xf]
    %v1743 = vld [vmem:[%s3 + $0xfc] sm:$0xf]
    %v1744 = vld [vmem:[%s4] sm:$0x1]
    %v1746 = vperm.slane %v1744, 0
    %v1812 = vunpack.c.l.b16 %v1680
    %v1813 = vunpack.c.l.b16 %v1681
    %v1814 = vunpack.c.l.b16 %v1682
    %v1815 = vunpack.c.l.b16 %v1683
    %v1816 = vunpack.c.l.b16 %v1684
    %v1817 = vunpack.c.l.b16 %v1685
    %v1818 = vunpack.c.l.b16 %v1686
    %v1819 = vunpack.c.l.b16 %v1687
    %v1820 = vunpack.c.l.b16 %v1688
    %v1821 = vunpack.c.l.b16 %v1689
    %v1822 = vunpack.c.l.b16 %v1690
    %v1823 = vunpack.c.l.b16 %v1691
    %v1824 = vunpack.c.l.b16 %v1692
    %v1825 = vunpack.c.l.b16 %v1693
    %v1826 = vunpack.c.l.b16 %v1694
    %v1827 = vunpack.c.l.b16 %v1695
    %v1828 = vunpack.c.l.b16 %v1696
    %v1829 = vunpack.c.l.b16 %v1697
    %v1830 = vunpack.c.l.b16 %v1698
    %v1831 = vunpack.c.l.b16 %v1699
    %v1832 = vunpack.c.l.b16 %v1700
    %v1833 = vunpack.c.l.b16 %v1701
    %v1834 = vunpack.c.l.b16 %v1702
    %v1835 = vunpack.c.l.b16 %v1703
    %v1836 = vunpack.c.l.b16 %v1704
    %v1837 = vunpack.c.l.b16 %v1705
    %v1838 = vunpack.c.l.b16 %v1706
    %v1839 = vunpack.c.l.b16 %v1707
    %v1840 = vunpack.c.l.b16 %v1708
    %v1841 = vunpack.c.l.b16 %v1709
    %v1842 = vunpack.c.l.b16 %v1710
    %v1843 = vunpack.c.l.b16 %v1711
    %v1844 = vunpack.c.l.b16 %v1712
    %v1845 = vunpack.c.l.b16 %v1713
    %v1846 = vunpack.c.l.b16 %v1714
    %v1847 = vunpack.c.l.b16 %v1715
    %v1848 = vunpack.c.l.b16 %v1716
    %v1849 = vunpack.c.l.b16 %v1717
    %v1850 = vunpack.c.l.b16 %v1718
    %v1851 = vunpack.c.l.b16 %v1719
    %v1852 = vunpack.c.l.b16 %v1720
    %v1853 = vunpack.c.l.b16 %v1721
    %v1854 = vunpack.c.l.b16 %v1722
    %v1855 = vunpack.c.l.b16 %v1723
    %v1856 = vunpack.c.l.b16 %v1724
    %v1857 = vunpack.c.l.b16 %v1725
    %v1858 = vunpack.c.l.b16 %v1726
    %v1859 = vunpack.c.l.b16 %v1727
    %v1860 = vunpack.c.l.b16 %v1728
    %v1861 = vunpack.c.l.b16 %v1729
    %v1862 = vunpack.c.l.b16 %v1730
    %v1863 = vunpack.c.l.b16 %v1731
    %v1864 = vunpack.c.l.b16 %v1732
    %v1865 = vunpack.c.l.b16 %v1733
    %v1866 = vunpack.c.l.b16 %v1734
    %v1867 = vunpack.c.l.b16 %v1735
    %v1868 = vunpack.c.l.b16 %v1736
    %v1869 = vunpack.c.l.b16 %v1737
    %v1870 = vunpack.c.l.b16 %v1738
    %v1871 = vunpack.c.l.b16 %v1739
    %v1872 = vunpack.c.l.b16 %v1740
    %v1873 = vunpack.c.l.b16 %v1741
    %v1874 = vunpack.c.l.b16 %v1742
    %v1875 = vunpack.c.l.b16 %v1743
    %v1876 = vpack.c.b16 %v1813, %v1812
    %v1877 = vpack.c.b16 %v1815, %v1814
    %v1878 = vpack.c.b16 %v1817, %v1816
    %v1879 = vpack.c.b16 %v1819, %v1818
    %v1880 = vpack.c.b16 %v1821, %v1820
    %v1881 = vpack.c.b16 %v1823, %v1822
    %v1882 = vpack.c.b16 %v1825, %v1824
    %v1883 = vpack.c.b16 %v1827, %v1826
    %v1884 = vpack.c.b16 %v1829, %v1828
    %v1885 = vpack.c.b16 %v1831, %v1830
    %v1886 = vpack.c.b16 %v1833, %v1832
    %v1887 = vpack.c.b16 %v1835, %v1834
    %v1888 = vpack.c.b16 %v1837, %v1836
    %v1889 = vpack.c.b16 %v1839, %v1838
    %v1890 = vpack.c.b16 %v1841, %v1840
    %v1891 = vpack.c.b16 %v1843, %v1842
    %v1892 = vpack.c.b16 %v1845, %v1844
    %v1893 = vpack.c.b16 %v1847, %v1846
    %v1894 = vpack.c.b16 %v1849, %v1848
    %v1895 = vpack.c.b16 %v1851, %v1850
    %v1896 = vpack.c.b16 %v1853, %v1852
    %v1897 = vpack.c.b16 %v1855, %v1854
    %v1898 = vpack.c.b16 %v1857, %v1856
    %v1899 = vpack.c.b16 %v1859, %v1858
    %v1900 = vpack.c.b16 %v1861, %v1860
    %v1901 = vpack.c.b16 %v1863, %v1862
    %v1902 = vpack.c.b16 %v1865, %v1864
    %v1903 = vpack.c.b16 %v1867, %v1866
    %v1904 = vpack.c.b16 %v1869, %v1868
    %v1905 = vpack.c.b16 %v1871, %v1870
    %v1906 = vpack.c.b16 %v1873, %v1872
    %v1907 = vpack.c.b16 %v1875, %v1874
    %1940 = vmatpush.bf16.msra.mxu0 %v1883
    %1941 = vmatpush.bf16.msra.mxu0 %v1882
    %1942 = vmatpush.bf16.msra.mxu0 %v1881
    %1943 = vmatpush.bf16.msra.mxu0 %v1880
    %1944 = vmatpush.bf16.msra.mxu0 %v1879
    %1945 = vmatpush.bf16.msra.mxu0 %v1878
    %1946 = vmatpush.bf16.msra.mxu0 %v1877
    %1947 = vmatpush.bf16.msra.mxu0 %v1876
    %1948 = vmatmul.bf16.gmra.mxu0 %v1676
    %v1949 = vpop.f32.mrf.mxu0
    %v1950 = vadd.f32 %v1746, %v1949
    %v1951 = vpop.f32.mrf.mxu0
    %v1952 = vadd.f32 %v1746, %v1951
    %1953 = vdwg.mxu0
    %1954 = vmatpush.bf16.msra.mxu0 %v1891
    %1955 = vmatpush.bf16.msra.mxu0 %v1890
    %1956 = vmatpush.bf16.msra.mxu0 %v1889
    %1957 = vmatpush.bf16.msra.mxu0 %v1888
    %1958 = vmatpush.bf16.msra.mxu0 %v1887
    %1959 = vmatpush.bf16.msra.mxu0 %v1886
    %1960 = vmatpush.bf16.msra.mxu0 %v1885
    %1961 = vmatpush.bf16.msra.mxu0 %v1884
    %1962 = vmatmul.bf16.gmra.mxu0 %v1677
    %v1963 = vpop.f32.mrf.mxu0
    %v1964 = vadd.f32 %v1950, %v1963
    %v1965 = vpop.f32.mrf.mxu0
    %v1966 = vadd.f32 %v1952, %v1965
    %1967 = vdwg.mxu0
    %1968 = vmatpush.bf16.msra.mxu0 %v1899
    %1969 = vmatpush.bf16.msra.mxu0 %v1898
    %1970 = vmatpush.bf16.msra.mxu0 %v1897
    %1971 = vmatpush.bf16.msra.mxu0 %v1896
    %1972 = vmatpush.bf16.msra.mxu0 %v1895
    %1973 = vmatpush.bf16.msra.mxu0 %v1894
    %1974 = vmatpush.bf16.msra.mxu0 %v1893
    %1975 = vmatpush.bf16.msra.mxu0 %v1892
    %1976 = vmatmul.bf16.gmra.mxu0 %v1678
    %v1977 = vpop.f32.mrf.mxu0
    %v1978 = vadd.f32 %v1964, %v1977
    %v1979 = vpop.f32.mrf.mxu0
    %v1980 = vadd.f32 %v1966, %v1979
    %1981 = vdwg.mxu0
    %1982 = vmatpush.bf16.msra.mxu0 %v1907
    %1983 = vmatpush.bf16.msra.mxu0 %v1906
    %1984 = vmatpush.bf16.msra.mxu0 %v1905
    %1985 = vmatpush.bf16.msra.mxu0 %v1904
    %1986 = vmatpush.bf16.msra.mxu0 %v1903
    %1987 = vmatpush.bf16.msra.mxu0 %v1902
    %1988 = vmatpush.bf16.msra.mxu0 %v1901
    %1989 = vmatpush.bf16.msra.mxu0 %v1900
    %1990 = vmatmul.bf16.gmra.mxu0 %v1679
    %v1991 = vpop.f32.mrf.mxu0
    %v1992 = vadd.f32 %v1978, %v1991
    %v1993 = vpop.f32.mrf.mxu0
    %v1994 = vadd.f32 %v1980, %v1993
    %1995 = vdwg.mxu0
    %v1996 = vxor.u32 %v1992, 2147483648
    %v1997 = vxor.u32 %v1994, 2147483648
    %v1998 = vmul.f32 %v1996, 1.442695
    %v1999 = vpow.pop %v1998
    %v2000 = vmul.f32 %v1997, 1.442695
    %v2001 = vpow.pop %v2000
    %v2002 = vadd.f32 %v1999, 1.0
    %v2003 = vadd.f32 %v2001, 1.0
    %v2004 = vrcp.pop %v2002
    %v2005 = vmul.f32 %v2002, %v2004
    %v2006 = vsub.f32 1.0, %v2005
    %v2007 = vmul.f32 %v2004, %v2006
    %v2008 = vadd.f32 %v2004, %v2007
    %vm2009 = vweird.f32 %v2002
    %vm2010 = vweird.f32 %v2004
    %vm2011 = vmor %vm2009, %vm2010
    %v2012 = vsel %vm2011, %v2004, %v2008
    %v2013 = vand.u32 2147483647, %v2002
    %vm2014 = vcmp.eq.f32.partialorder %v2013, 8.507059e+37
    %v2015 = vand.u32 %v2002, 2147483648
    %v2016 = vor.u32 1.1754944e-38, %v2015
    %v2017 = vsel %vm2014, %v2016, %v2012
    %v2018 = vmul.f32 1.0, %v2017
    %v2019 = vrcp.pop %v2003
    %v2020 = vmul.f32 %v2003, %v2019
    %v2021 = vsub.f32 1.0, %v2020
    %v2022 = vmul.f32 %v2019, %v2021
    %v2023 = vadd.f32 %v2019, %v2022
    %vm2024 = vweird.f32 %v2003
    %vm2025 = vweird.f32 %v2019
    %vm2026 = vmor %vm2024, %vm2025
    %v2027 = vsel %vm2026, %v2019, %v2023
    %v2028 = vand.u32 2147483647, %v2003
    %vm2029 = vcmp.eq.f32.partialorder %v2028, 8.507059e+37
    %v2030 = vand.u32 %v2003, 2147483648
    %v2031 = vor.u32 1.1754944e-38, %v2030
    %v2032 = vsel %vm2029, %v2031, %v2027
    %v2033 = vmul.f32 1.0, %v2032
    %v2034 = vpack.c.bf16 %v2033, %v2018
    %v2035 = vld [vmem:[%s5] sm:$0xf]
    %v2036 = vld [vmem:[%s5 + $0x4] sm:$0xf]
    %v2037 = vld [vmem:[%s5 + $0x8] sm:$0xf]
    %v2038 = vld [vmem:[%s5 + $0xc] sm:$0xf]
    %v2039 = vld [vmem:[%s5 + $0x10] sm:$0xf]
    %v2040 = vld [vmem:[%s5 + $0x14] sm:$0xf]
    %v2041 = vld [vmem:[%s5 + $0x18] sm:$0xf]
    %v2042 = vld [vmem:[%s5 + $0x1c] sm:$0xf]
    %v2043 = vld [vmem:[%s5 + $0x20] sm:$0xf]
    %v2044 = vld [vmem:[%s5 + $0x24] sm:$0xf]
    %v2045 = vld [vmem:[%s5 + $0x28] sm:$0xf]
    %v2046 = vld [vmem:[%s5 + $0x2c] sm:$0xf]
    %v2047 = vld [vmem:[%s5 + $0x30] sm:$0xf]
    %v2048 = vld [vmem:[%s5 + $0x34] sm:$0xf]
    %v2049 = vld [vmem:[%s5 + $0x38] sm:$0xf]
    %v2050 = vld [vmem:[%s5 + $0x3c] sm:$0xf]
    %v2051 = vld [vmem:[%s6] sm:$0x1]
    %v2053 = vperm.slane %v2051, 0
    %v2071 = vunpack.c.l.b16 %v2035
    %v2072 = vunpack.c.l.b16 %v2036
    %v2073 = vunpack.c.l.b16 %v2037
    %v2074 = vunpack.c.l.b16 %v2038
    %v2075 = vunpack.c.l.b16 %v2039
    %v2076 = vunpack.c.l.b16 %v2040
    %v2077 = vunpack.c.l.b16 %v2041
    %v2078 = vunpack.c.l.b16 %v2042
    %v2079 = vunpack.c.l.b16 %v2043
    %v2080 = vunpack.c.l.b16 %v2044
    %v2081 = vunpack.c.l.b16 %v2045
    %v2082 = vunpack.c.l.b16 %v2046
    %v2083 = vunpack.c.l.b16 %v2047
    %v2084 = vunpack.c.l.b16 %v2048
    %v2085 = vunpack.c.l.b16 %v2049
    %v2086 = vunpack.c.l.b16 %v2050
    %v2087 = vpack.c.b16 %v2072, %v2071
    %v2088 = vpack.c.b16 %v2074, %v2073
    %v2089 = vpack.c.b16 %v2076, %v2075
    %v2090 = vpack.c.b16 %v2078, %v2077
    %v2091 = vpack.c.b16 %v2080, %v2079
    %v2092 = vpack.c.b16 %v2082, %v2081
    %v2093 = vpack.c.b16 %v2084, %v2083
    %v2094 = vpack.c.b16 %v2086, %v2085
    %2103 = vmatpush.bf16.msra.mxu0 %v2094
    %2104 = vmatpush.bf16.msra.mxu0 %v2093
    %2105 = vmatpush.bf16.msra.mxu0 %v2092
    %2106 = vmatpush.bf16.msra.mxu0 %v2091
    %2107 = vmatpush.bf16.msra.mxu0 %v2090
    %2108 = vmatpush.bf16.msra.mxu0 %v2089
    %2109 = vmatpush.bf16.msra.mxu0 %v2088
    %2110 = vmatpush.bf16.msra.mxu0 %v2087
    %2111 = vmatmul.bf16.gmra.mxu0 %v2034
    %v2112 = vpop.f32.mrf.mxu0
    %v2113 = vadd.f32 %v2053, %v2112
    %v2114 = vpop.f32.mrf.mxu0
    %v2115 = vadd.f32 %v2053, %v2114
    %2116 = vdwg.mxu0
    %v2117 = vmax.f32 %v2113, 0.0
    %v2118 = vmax.f32 %v2115, 0.0
    %v2119 = vpack.c.bf16 %v2118, %v2117
    %v2120 = vld [vmem:[#allocation4] sm:$0xf]
    %v2121 = vld [vmem:[#allocation4 + $0x4] sm:$0xf]
    %v2122 = vld [vmem:[#allocation4 + $0x8] sm:$0xf]
    %v2123 = vld [vmem:[#allocation4 + $0xc] sm:$0xf]
    %v2124 = vld [vmem:[#allocation4 + $0x10] sm:$0xf]
    %v2125 = vld [vmem:[#allocation4 + $0x14] sm:$0xf]
    %v2126 = vld [vmem:[#allocation4 + $0x18] sm:$0xf]
    %v2127 = vld [vmem:[#allocation4 + $0x1c] sm:$0xf]
    %v2128 = vld [vmem:[#allocation4 + $0x20] sm:$0xf]
    %v2129 = vld [vmem:[#allocation4 + $0x24] sm:$0xf]
    %v2130 = vld [vmem:[#allocation4 + $0x28] sm:$0xf]
    %v2131 = vld [vmem:[#allocation4 + $0x2c] sm:$0xf]
    %v2132 = vld [vmem:[#allocation4 + $0x30] sm:$0xf]
    %v2133 = vld [vmem:[#allocation4 + $0x34] sm:$0xf]
    %v2134 = vld [vmem:[#allocation4 + $0x38] sm:$0xf]
    %v2135 = vld [vmem:[#allocation4 + $0x3c] sm:$0xf]
    %v2136 = vld [vmem:[%s8] sm:$0x1]
    %v2138 = vperm.slane %v2136, 0
    %v2156 = vunpack.c.l.b16 %v2120
    %v2157 = vunpack.c.l.b16 %v2121
    %v2158 = vunpack.c.l.b16 %v2122
    %v2159 = vunpack.c.l.b16 %v2123
    %v2160 = vunpack.c.l.b16 %v2124
    %v2161 = vunpack.c.l.b16 %v2125
    %v2162 = vunpack.c.l.b16 %v2126
    %v2163 = vunpack.c.l.b16 %v2127
    %v2164 = vunpack.c.l.b16 %v2128
    %v2165 = vunpack.c.l.b16 %v2129
    %v2166 = vunpack.c.l.b16 %v2130
    %v2167 = vunpack.c.l.b16 %v2131
    %v2168 = vunpack.c.l.b16 %v2132
    %v2169 = vunpack.c.l.b16 %v2133
    %v2170 = vunpack.c.l.b16 %v2134
    %v2171 = vunpack.c.l.b16 %v2135
    %v2172 = vpack.c.b16 %v2157, %v2156
    %v2173 = vpack.c.b16 %v2159, %v2158
    %v2174 = vpack.c.b16 %v2161, %v2160
    %v2175 = vpack.c.b16 %v2163, %v2162
    %v2176 = vpack.c.b16 %v2165, %v2164
    %v2177 = vpack.c.b16 %v2167, %v2166
    %v2178 = vpack.c.b16 %v2169, %v2168
    %v2179 = vpack.c.b16 %v2171, %v2170
    %2188 = vmatpush.bf16.msra.mxu0 %v2179
    %2189 = vmatpush.bf16.msra.mxu0 %v2178
    %2190 = vmatpush.bf16.msra.mxu0 %v2177
    %2191 = vmatpush.bf16.msra.mxu0 %v2176
    %2192 = vmatpush.bf16.msra.mxu0 %v2175
    %2193 = vmatpush.bf16.msra.mxu0 %v2174
    %2194 = vmatpush.bf16.msra.mxu0 %v2173
    %2195 = vmatpush.bf16.msra.mxu0 %v2172
    %2196 = vmatmul.bf16.gmra.mxu0 %v2119
    %v2197 = vpop.f32.mrf.mxu0
    %v2198 = vadd.f32 %v2138, %v2197
    %v2199 = vpop.f32.mrf.mxu0
    %v2200 = vadd.f32 %v2138, %v2199
    %2201 = vdwg.mxu0
    %2202 = vmax.xlane.f32.xlu0 %v2198
    %v2203 = vpop.xlane.xlu0 %2202
    %2204 = vmax.xlane.f32.xlu0 %v2200
    %v2205 = vpop.xlane.xlu0 %2204
    %v2206 = vsub.f32 %v2198, %v2203
    %v2207 = vsub.f32 %v2200, %v2205
    %v2208 = vmul.f32 %v2206, 1.442695
    %v2209 = vpow.pop %v2208
    %v2210 = vmul.f32 %v2207, 1.442695
    %v2211 = vpow.pop %v2210
    %2212 = vadd.xlane.f32.xlu0 %v2209
    %v2213 = vpop.xlane.xlu0 %2212
    %2214 = vadd.xlane.f32.xlu0 %v2211
    %v2215 = vpop.xlane.xlu0 %2214
    %v2216 = vlog2.pop %v2213
    %v2217 = vmul.f32 %v2216, 0.6931472
    %v2218 = vlog2.pop %v2215
    %v2219 = vmul.f32 %v2218, 0.6931472
    %v2220 = vsub.f32 %v2206, %v2217
    %v2221 = vsub.f32 %v2207, %v2219
    %v2222 = vpack.c.bf16 %v2220, %v2220
    %v2223 = vpack.c.bf16 %v2221, %v2221
    %2224 = vst [vmem:[%s9] sm:$0xf] %v2222
    %2225 = vst [vmem:[%s9 + $0x4] sm:$0xf] %v2223
    // Predicated region
    $region46: #{qfourview_forward.1} parent=1 // pred_check
      _
    $region47: #{qfourview_forward.1} parent=1 // pred_check_branch
      %2227 = sbr.rel (0) target = $region49
    $region48: #{qfourview_forward.1} parent=1 // pred_region
      _
    $region49: #{qfourview_forward.1} parent=1 // pred_fallthru
      _
    // Predicated region
    $region50: #{qfourview_forward.1} parent=1 // pred_check
      _
    $region51: #{qfourview_forward.1} parent=1 // pred_check_branch
      %2229 = sbr.rel (0) target = $region53
    $region52: #{qfourview_forward.1} parent=1 // pred_region
      _
    $region53: #{qfourview_forward.1} parent=1 // pred_fallthru
      _
    %2230 = vsyncpa [#allocation3], 1
    %2231 = vsyncpa [#allocation5], 1

</llo_original>
